<compile_context>
chip_gen: v7x
topology: tpu7x:2x2x1
jax: 0.10.0
libtpu: 0.0.40
codegen_flags: <defaults>
</compile_context>

<pallas_src>
import jax
import jax.numpy as jnp
import numpy as np
from jax.experimental import pallas as pl
from jax.experimental.pallas import tpu as pltpu

# ------------------------- problem sizes (small) -------------------------
S = 8          # sequence length
B = 2          # batch
FEAT = 2048    # fc1 input features
HANDF = 126    # lhand(63) + rhand(63) -> fc_h input features
HANDP = 128    # hand features padded to a full lane vreg
H = 32         # hidden units
C = 8          # act_classes
G = 4 * H      # LSTM gate width
U_STEPS = 2    # unrolling chain length for t = S-1 is S - (S-1) + 1 = 2

HI = jax.lax.Precision.HIGHEST


def _full_spec(shape):
    """BlockSpec covering the whole array (grid of size 1 along every axis)."""
    return pl.BlockSpec(shape, lambda *_: tuple(0 for _ in shape))


# ------------------------------ LSTM cell ----------------------------------
def _lstm_cell(xg, h, c, whh_t):
    """PyTorch LSTM cell (gate order i, f, g, o).

    xg    : precomputed input projection x @ Wih^T + b, shape (B, 4H)
    whh_t : pre-transposed recurrent weight, shape (H, 4H)
    """
    gates = xg + jnp.dot(h, whh_t, preferred_element_type=jnp.float32)
    sg = jax.nn.sigmoid(gates)                 # one dense full-width EUP op
    i = sg[:, 0 * H:1 * H]
    f = sg[:, 1 * H:2 * H]
    o = sg[:, 3 * H:4 * H]
    g = jnp.tanh(gates[:, 2 * H:3 * H])        # narrow tanh only on the g slice
    c_new = f * c + i * g
    h_new = o * jnp.tanh(c_new)
    return h_new, c_new


# --------------------------- fused RULSTM kernel ----------------------------
def rulstm_kernel(x_ref, hands_ref,                       # activations
                  w1t_ref, b1_ref, fcht_ref, bh_ref,      # fc1 / fc_h
                  r_wxt_ref, r_wht_ref, r_whht_ref, r_b_ref,   # rolling LSTM
                  u_wxt_ref, u_wht_ref, u_whht_ref, u_b_ref,   # unrolling LSTM
                  wct_ref, bc_ref,                         # classifier
                  out_ref):
    # ---- fc1 + fc_h over all S*B rows (the only non-trivial matmuls) ----
    xh = jnp.dot(x_ref[...], w1t_ref[...],
                 preferred_element_type=jnp.float32) + b1_ref[...]     # (S*B, H)
    hh = jnp.dot(hands_ref[...], fcht_ref[...],
                 preferred_element_type=jnp.float32) + bh_ref[...]     # (S*B, H)

    # ---- rolling (Open) LSTM input projection for every timestep at once ----
    # == concat([xh, hh], -1) @ r_wih.T + r_b, without the concat
    xg_roll = (jnp.dot(xh, r_wxt_ref[...], preferred_element_type=jnp.float32)
               + jnp.dot(hh, r_wht_ref[...], preferred_element_type=jnp.float32)
               + r_b_ref[...])                                         # (S*B, 4H)

    # ---- rolling LSTM: fully unrolled in-kernel time loop, carry (h, c) ----
    # (only the final state feeds the one prediction that is returned)
    r_whht = r_whht_ref[...]
    h = jnp.zeros((B, H), jnp.float32)
    c = jnp.zeros((B, H), jnp.float32)
    for t in range(S):
        h, c = _lstm_cell(xg_roll[t * B:(t + 1) * B, :], h, c, r_whht)

    # ---- unrolling LSTM: only the t = S-1 chain is needed (out = y[:,-1,:]) ---
    xh_l = xh[(S - 1) * B:, :]                                         # (B, H)
    hh_l = hh[(S - 1) * B:, :]
    xg_u = (jnp.dot(xh_l, u_wxt_ref[...], preferred_element_type=jnp.float32)
            + jnp.dot(hh_l, u_wht_ref[...], preferred_element_type=jnp.float32)
            + u_b_ref[...])                                            # (B, 4H)
    u_whht = u_whht_ref[...]
    for _ in range(U_STEPS):                   # repeated input, 2 steps
        h, c = _lstm_cell(xg_u, h, c, u_whht)

    # ---- classifier (dropout = identity at inference) ----
    out_ref[...] = jnp.dot(h, wct_ref[...],
                           preferred_element_type=jnp.float32) + bc_ref[...]


# ------------------------------ full forward -------------------------------
@jax.jit
def rulstm_forward(x, lh, rh, p):
    # Wrapper-side param prep (transposes / padding / gate split).  In a real
    # deployment these would be precomputed once and cached.
    hands = jnp.concatenate([lh, rh], axis=-1).astype(jnp.float32)       # (S,B,126)
    hands = jnp.pad(hands, ((0, 0), (0, 0), (0, HANDP - HANDF)))         # lane pad
    x2d = x.reshape(S * B, FEAT).astype(jnp.float32)
    hands2d = hands.reshape(S * B, HANDP)

    w1t = p["w1"].T                                                      # (2048, H)
    fcht = jnp.pad(p["wh"], ((0, 0), (0, HANDP - HANDF))).T              # (128, H)
    r_wxt = p["r_wih"][:, :H].T                                          # (H, 4H)
    r_wht = p["r_wih"][:, H:].T                                          # (H, 4H)
    u_wxt = p["u_wih"][:, :H].T
    u_wht = p["u_wih"][:, H:].T
    r_whht = p["r_whh"].T                                                # (H, 4H)
    u_whht = p["u_whh"].T
    wct = p["wc"].T                                                      # (H, C)

    args = (x2d, hands2d,
            w1t, p["b1"], fcht, p["bh"],
            r_wxt, r_wht, r_whht, p["r_b"],
            u_wxt, u_wht, u_whht, p["u_b"],
            wct, p["bc"])

    return pl.pallas_call(
        rulstm_kernel,
        out_shape=jax.ShapeDtypeStruct((B, C), jnp.float32),
        grid=(1,),
        in_specs=[_full_spec(a.shape) for a in args],
        out_specs=_full_spec((B, C)),
        compiler_params=pltpu.CompilerParams(
            dimension_semantics=("arbitrary",)),
    )(*args)


# --------------------------- pure-JAX reference -----------------------------
# Full-module reference: computes EVERY prediction (like RULSTM.forward in
# eval mode) and then keeps y[:, -1, :], validating that the kernel's
# dead-compute elimination is semantics-preserving.
def _ref_cell(xt, h, c, wih, whh, b):
    gates = (jnp.dot(xt, wih.T, precision=HI)
             + jnp.dot(h, whh.T, precision=HI) + b)
    i = jax.nn.sigmoid(gates[:, :H])
    f = jax.nn.sigmoid(gates[:, H:2 * H])
    g = jnp.tanh(gates[:, 2 * H:3 * H])
    o = jax.nn.sigmoid(gates[:, 3 * H:4 * H])
    c2 = f * c + i * g
    return o * jnp.tanh(c2), c2


def ref_forward(x, lh, rh, p):
    hands = jnp.concatenate([lh, rh], axis=-1).astype(jnp.float32)
    hf = jnp.dot(hands, p["wh"].T, precision=HI) + p["bh"]
    xf = jnp.dot(x, p["w1"].T, precision=HI) + p["b1"]
    xc = jnp.concatenate([xf, hf], axis=-1)              # (S, B, 2H)

    h = jnp.zeros((B, H), jnp.float32)
    c = jnp.zeros((B, H), jnp.float32)
    hs, cs = [], []
    for t in range(S):
        h, c = _ref_cell(xc[t], h, c, p["r_wih"], p["r_whh"], p["r_b"][0])
        hs.append(h)
        cs.append(c)

    preds = []
    for t in range(S):
        hh_, cc_ = hs[t], cs[t]
        for _ in range(S - t + 1):
            hh_, cc_ = _ref_cell(xc[t], hh_, cc_, p["u_wih"], p["u_whh"],
                                 p["u_b"][0])
        preds.append(hh_)
    # stack(predictions, dim=1) -> (B, S, H); classifier; y[:, -1, :]
    return jnp.dot(preds[-1], p["wc"].T, precision=HI) + p["bc"]   # (B, C)


# ------------------------------ params / main -------------------------------
def init_params(key):
    ks = jax.random.split(key, 16)

    def mat(k, out_f, in_f):
        return (1.0 / np.sqrt(in_f)) * jax.random.normal(k, (out_f, in_f),
                                                         jnp.float32)

    def vec(k, n, fan):
        return (1.0 / np.sqrt(fan)) * jax.random.normal(k, (1, n), jnp.float32)

    return {
        "w1": mat(ks[0], H, FEAT),   "b1": vec(ks[1], H, FEAT),     # fc1
        "wh": mat(ks[2], H, HANDF),  "bh": vec(ks[3], H, HANDF),    # fc_h
        # rolling LSTM (input = 2H, hidden = H); combine b_ih + b_hh
        "r_wih": mat(ks[4], G, 2 * H), "r_whh": mat(ks[5], G, H),
        "r_b": vec(ks[6], G, H) + vec(ks[7], G, H),
        # unrolling LSTM
        "u_wih": mat(ks[8], G, 2 * H), "u_whh": mat(ks[9], G, H),
        "u_b": vec(ks[10], G, H) + vec(ks[11], G, H),
        # classifier
        "wc": mat(ks[12], C, H), "bc": vec(ks[13], C, H),
    }


if __name__ == "__main__":
    key = jax.random.PRNGKey(0)
    k_x, k_l, k_r, k_p = jax.random.split(key, 4)
    x = jax.random.normal(k_x, (S, B, FEAT), jnp.float32)
    lhand = jax.random.normal(k_l, (S, B, 63), jnp.float32)
    rhand = jax.random.normal(k_r, (S, B, 63), jnp.float32)
    params = init_params(k_p)

    out = jax.block_until_ready(rulstm_forward(x, lhand, rhand, params))
    ref = jax.block_until_ready(ref_forward(x, lhand, rhand, params))

    assert out.shape == (B, C)
    np.testing.assert_allclose(np.asarray(out), np.asarray(ref),
                               rtol=2e-4, atol=2e-4)
    print("KERNEL_OK")
</pallas_src>

<mosaic_0001>
module attributes {stable_mosaic.version = 11 : i64} {
  func.func @rulstm_kernel(%arg0: i32, %arg1: memref<16x2048xf32, #tpu.memory_space<vmem>>, %arg2: memref<16x128xf32, #tpu.memory_space<vmem>>, %arg3: memref<2048x32xf32, #tpu.memory_space<vmem>>, %arg4: memref<1x32xf32, #tpu.memory_space<vmem>>, %arg5: memref<128x32xf32, #tpu.memory_space<vmem>>, %arg6: memref<1x32xf32, #tpu.memory_space<vmem>>, %arg7: memref<32x128xf32, #tpu.memory_space<vmem>>, %arg8: memref<32x128xf32, #tpu.memory_space<vmem>>, %arg9: memref<32x128xf32, #tpu.memory_space<vmem>>, %arg10: memref<1x128xf32, #tpu.memory_space<vmem>>, %arg11: memref<32x128xf32, #tpu.memory_space<vmem>>, %arg12: memref<32x128xf32, #tpu.memory_space<vmem>>, %arg13: memref<32x128xf32, #tpu.memory_space<vmem>>, %arg14: memref<1x128xf32, #tpu.memory_space<vmem>>, %arg15: memref<32x8xf32, #tpu.memory_space<vmem>>, %arg16: memref<1x8xf32, #tpu.memory_space<vmem>>, %arg17: memref<2x8xf32, #tpu.memory_space<vmem>>) attributes {dimension_semantics = [#tpu.dimension_semantics<arbitrary>], iteration_bounds = array<i64: 1>, scalar_prefetch = 0 : i64, scratch_operands = 0 : i64, tpu.core_type = #tpu.core_type<tc>, window_params = [{pipeline_mode = #tpu.pipeline_mode<synchronous>, transform_indices = @transform_0, window_bounds = array<i64: 16, 2048>}, {pipeline_mode = #tpu.pipeline_mode<synchronous>, transform_indices = @transform_1, window_bounds = array<i64: 16, 128>}, {pipeline_mode = #tpu.pipeline_mode<synchronous>, transform_indices = @transform_2, window_bounds = array<i64: 2048, 32>}, {pipeline_mode = #tpu.pipeline_mode<synchronous>, transform_indices = @transform_3, window_bounds = array<i64: 1, 32>}, {pipeline_mode = #tpu.pipeline_mode<synchronous>, transform_indices = @transform_4, window_bounds = array<i64: 128, 32>}, {pipeline_mode = #tpu.pipeline_mode<synchronous>, transform_indices = @transform_5, window_bounds = array<i64: 1, 32>}, {pipeline_mode = #tpu.pipeline_mode<synchronous>, transform_indices = @transform_6, window_bounds = array<i64: 32, 128>}, {pipeline_mode = #tpu.pipeline_mode<synchronous>, transform_indices = @transform_7, window_bounds = array<i64: 32, 128>}, {pipeline_mode = #tpu.pipeline_mode<synchronous>, transform_indices = @transform_8, window_bounds = array<i64: 32, 128>}, {pipeline_mode = #tpu.pipeline_mode<synchronous>, transform_indices = @transform_9, window_bounds = array<i64: 1, 128>}, {pipeline_mode = #tpu.pipeline_mode<synchronous>, transform_indices = @transform_10, window_bounds = array<i64: 32, 128>}, {pipeline_mode = #tpu.pipeline_mode<synchronous>, transform_indices = @transform_11, window_bounds = array<i64: 32, 128>}, {pipeline_mode = #tpu.pipeline_mode<synchronous>, transform_indices = @transform_12, window_bounds = array<i64: 32, 128>}, {pipeline_mode = #tpu.pipeline_mode<synchronous>, transform_indices = @transform_13, window_bounds = array<i64: 1, 128>}, {pipeline_mode = #tpu.pipeline_mode<synchronous>, transform_indices = @transform_14, window_bounds = array<i64: 32, 8>}, {pipeline_mode = #tpu.pipeline_mode<synchronous>, transform_indices = @transform_15, window_bounds = array<i64: 1, 8>}, {pipeline_mode = #tpu.pipeline_mode<synchronous>, transform_indices = @transform_16, window_bounds = array<i64: 2, 8>}]} {
    %c0 = arith.constant 0 : index
    %c0_0 = arith.constant 0 : index
    %0 = vector.load %arg1[%c0, %c0_0] : memref<16x2048xf32, #tpu.memory_space<vmem>>, vector<16x2048xf32>
    %c0_1 = arith.constant 0 : index
    %c0_2 = arith.constant 0 : index
    %1 = vector.load %arg3[%c0_1, %c0_2] : memref<2048x32xf32, #tpu.memory_space<vmem>>, vector<2048x32xf32>
    %cst = arith.constant dense<0.000000e+00> : vector<16x32xf32>
    %2 = tpu.matmul %0, %1, %cst {dimension_numbers = #tpu.dot_dimension_numbers<[1], [0], [0], [1], [0, 0, 1, 1], [], []>} : vector<16x2048xf32>, vector<2048x32xf32>, vector<16x32xf32> -> vector<16x32xf32>
    %c0_3 = arith.constant 0 : index
    %c0_4 = arith.constant 0 : index
    %3 = vector.load %arg4[%c0_3, %c0_4] : memref<1x32xf32, #tpu.memory_space<vmem>>, vector<1x32xf32>
    %4 = vector.broadcast %3 : vector<1x32xf32> to vector<16x32xf32>
    %5 = arith.addf %2, %4 : vector<16x32xf32>
    %c0_5 = arith.constant 0 : index
    %c0_6 = arith.constant 0 : index
    %6 = vector.load %arg2[%c0_5, %c0_6] : memref<16x128xf32, #tpu.memory_space<vmem>>, vector<16x128xf32>
    %c0_7 = arith.constant 0 : index
    %c0_8 = arith.constant 0 : index
    %7 = vector.load %arg5[%c0_7, %c0_8] : memref<128x32xf32, #tpu.memory_space<vmem>>, vector<128x32xf32>
    %cst_9 = arith.constant dense<0.000000e+00> : vector<16x32xf32>
    %8 = tpu.matmul %6, %7, %cst_9 {dimension_numbers = #tpu.dot_dimension_numbers<[1], [0], [0], [1], [0, 0, 1, 1], [], []>} : vector<16x128xf32>, vector<128x32xf32>, vector<16x32xf32> -> vector<16x32xf32>
    %c0_10 = arith.constant 0 : index
    %c0_11 = arith.constant 0 : index
    %9 = vector.load %arg6[%c0_10, %c0_11] : memref<1x32xf32, #tpu.memory_space<vmem>>, vector<1x32xf32>
    %10 = vector.broadcast %9 : vector<1x32xf32> to vector<16x32xf32>
    %11 = arith.addf %8, %10 : vector<16x32xf32>
    %c0_12 = arith.constant 0 : index
    %c0_13 = arith.constant 0 : index
    %12 = vector.load %arg7[%c0_12, %c0_13] : memref<32x128xf32, #tpu.memory_space<vmem>>, vector<32x128xf32>
    %cst_14 = arith.constant dense<0.000000e+00> : vector<16x128xf32>
    %13 = tpu.matmul %5, %12, %cst_14 {dimension_numbers = #tpu.dot_dimension_numbers<[1], [0], [0], [1], [0, 0, 1, 1], [], []>} : vector<16x32xf32>, vector<32x128xf32>, vector<16x128xf32> -> vector<16x128xf32>
    %c0_15 = arith.constant 0 : index
    %c0_16 = arith.constant 0 : index
    %14 = vector.load %arg8[%c0_15, %c0_16] : memref<32x128xf32, #tpu.memory_space<vmem>>, vector<32x128xf32>
    %cst_17 = arith.constant dense<0.000000e+00> : vector<16x128xf32>
    %15 = tpu.matmul %11, %14, %cst_17 {dimension_numbers = #tpu.dot_dimension_numbers<[1], [0], [0], [1], [0, 0, 1, 1], [], []>} : vector<16x32xf32>, vector<32x128xf32>, vector<16x128xf32> -> vector<16x128xf32>
    %16 = arith.addf %13, %15 : vector<16x128xf32>
    %c0_18 = arith.constant 0 : index
    %c0_19 = arith.constant 0 : index
    %17 = vector.load %arg10[%c0_18, %c0_19] : memref<1x128xf32, #tpu.memory_space<vmem>>, vector<1x128xf32>
    %18 = vector.broadcast %17 : vector<1x128xf32> to vector<16x128xf32>
    %19 = arith.addf %16, %18 : vector<16x128xf32>
    %c0_20 = arith.constant 0 : index
    %c0_21 = arith.constant 0 : index
    %20 = vector.load %arg9[%c0_20, %c0_21] : memref<32x128xf32, #tpu.memory_space<vmem>>, vector<32x128xf32>
    %cst_22 = arith.constant 0.000000e+00 : f32
    %21 = vector.broadcast %cst_22 : f32 to vector<2x32xf32>
    %cst_23 = arith.constant 0.000000e+00 : f32
    %22 = vector.broadcast %cst_23 : f32 to vector<2x32xf32>
    %23 = vector.extract_strided_slice %19 {offsets = [0, 0], sizes = [2, 128], strides = [1, 1]} : vector<16x128xf32> to vector<2x128xf32>
    %cst_24 = arith.constant dense<0.000000e+00> : vector<2x128xf32>
    %24 = tpu.matmul %21, %20, %cst_24 {dimension_numbers = #tpu.dot_dimension_numbers<[1], [0], [0], [1], [0, 0, 1, 1], [], []>} : vector<2x32xf32>, vector<32x128xf32>, vector<2x128xf32> -> vector<2x128xf32>
    %25 = arith.addf %23, %24 : vector<2x128xf32>
    %26 = arith.negf %25 : vector<2x128xf32>
    %27 = math.exp %26 : vector<2x128xf32>
    %cst_25 = arith.constant 1.000000e+00 : f32
    %28 = vector.broadcast %cst_25 : f32 to vector<2x128xf32>
    %29 = arith.addf %28, %27 : vector<2x128xf32>
    %30 = arith.divf %28, %29 : vector<2x128xf32>
    %31 = vector.extract_strided_slice %30 {offsets = [0, 0], sizes = [2, 32], strides = [1, 1]} : vector<2x128xf32> to vector<2x32xf32>
    %32 = vector.extract_strided_slice %30 {offsets = [0, 32], sizes = [2, 32], strides = [1, 1]} : vector<2x128xf32> to vector<2x32xf32>
    %33 = vector.extract_strided_slice %30 {offsets = [0, 96], sizes = [2, 32], strides = [1, 1]} : vector<2x128xf32> to vector<2x32xf32>
    %34 = vector.extract_strided_slice %25 {offsets = [0, 64], sizes = [2, 32], strides = [1, 1]} : vector<2x128xf32> to vector<2x32xf32>
    %35 = math.tanh %34 : vector<2x32xf32>
    %36 = arith.mulf %32, %22 : vector<2x32xf32>
    %37 = arith.mulf %31, %35 : vector<2x32xf32>
    %38 = arith.addf %36, %37 : vector<2x32xf32>
    %39 = math.tanh %38 : vector<2x32xf32>
    %40 = arith.mulf %33, %39 : vector<2x32xf32>
    %41 = vector.extract_strided_slice %19 {offsets = [2, 0], sizes = [2, 128], strides = [1, 1]} : vector<16x128xf32> to vector<2x128xf32>
    %cst_26 = arith.constant dense<0.000000e+00> : vector<2x128xf32>
    %42 = tpu.matmul %40, %20, %cst_26 {dimension_numbers = #tpu.dot_dimension_numbers<[1], [0], [0], [1], [0, 0, 1, 1], [], []>} : vector<2x32xf32>, vector<32x128xf32>, vector<2x128xf32> -> vector<2x128xf32>
    %43 = arith.addf %41, %42 : vector<2x128xf32>
    %44 = arith.negf %43 : vector<2x128xf32>
    %45 = math.exp %44 : vector<2x128xf32>
    %cst_27 = arith.constant 1.000000e+00 : f32
    %46 = vector.broadcast %cst_27 : f32 to vector<2x128xf32>
    %47 = arith.addf %46, %45 : vector<2x128xf32>
    %48 = arith.divf %46, %47 : vector<2x128xf32>
    %49 = vector.extract_strided_slice %48 {offsets = [0, 0], sizes = [2, 32], strides = [1, 1]} : vector<2x128xf32> to vector<2x32xf32>
    %50 = vector.extract_strided_slice %48 {offsets = [0, 32], sizes = [2, 32], strides = [1, 1]} : vector<2x128xf32> to vector<2x32xf32>
    %51 = vector.extract_strided_slice %48 {offsets = [0, 96], sizes = [2, 32], strides = [1, 1]} : vector<2x128xf32> to vector<2x32xf32>
    %52 = vector.extract_strided_slice %43 {offsets = [0, 64], sizes = [2, 32], strides = [1, 1]} : vector<2x128xf32> to vector<2x32xf32>
    %53 = math.tanh %52 : vector<2x32xf32>
    %54 = arith.mulf %50, %38 : vector<2x32xf32>
    %55 = arith.mulf %49, %53 : vector<2x32xf32>
    %56 = arith.addf %54, %55 : vector<2x32xf32>
    %57 = math.tanh %56 : vector<2x32xf32>
    %58 = arith.mulf %51, %57 : vector<2x32xf32>
    %59 = vector.extract_strided_slice %19 {offsets = [4, 0], sizes = [2, 128], strides = [1, 1]} : vector<16x128xf32> to vector<2x128xf32>
    %cst_28 = arith.constant dense<0.000000e+00> : vector<2x128xf32>
    %60 = tpu.matmul %58, %20, %cst_28 {dimension_numbers = #tpu.dot_dimension_numbers<[1], [0], [0], [1], [0, 0, 1, 1], [], []>} : vector<2x32xf32>, vector<32x128xf32>, vector<2x128xf32> -> vector<2x128xf32>
    %61 = arith.addf %59, %60 : vector<2x128xf32>
    %62 = arith.negf %61 : vector<2x128xf32>
    %63 = math.exp %62 : vector<2x128xf32>
    %cst_29 = arith.constant 1.000000e+00 : f32
    %64 = vector.broadcast %cst_29 : f32 to vector<2x128xf32>
    %65 = arith.addf %64, %63 : vector<2x128xf32>
    %66 = arith.divf %64, %65 : vector<2x128xf32>
    %67 = vector.extract_strided_slice %66 {offsets = [0, 0], sizes = [2, 32], strides = [1, 1]} : vector<2x128xf32> to vector<2x32xf32>
    %68 = vector.extract_strided_slice %66 {offsets = [0, 32], sizes = [2, 32], strides = [1, 1]} : vector<2x128xf32> to vector<2x32xf32>
    %69 = vector.extract_strided_slice %66 {offsets = [0, 96], sizes = [2, 32], strides = [1, 1]} : vector<2x128xf32> to vector<2x32xf32>
    %70 = vector.extract_strided_slice %61 {offsets = [0, 64], sizes = [2, 32], strides = [1, 1]} : vector<2x128xf32> to vector<2x32xf32>
    %71 = math.tanh %70 : vector<2x32xf32>
    %72 = arith.mulf %68, %56 : vector<2x32xf32>
    %73 = arith.mulf %67, %71 : vector<2x32xf32>
    %74 = arith.addf %72, %73 : vector<2x32xf32>
    %75 = math.tanh %74 : vector<2x32xf32>
    %76 = arith.mulf %69, %75 : vector<2x32xf32>
    %77 = vector.extract_strided_slice %19 {offsets = [6, 0], sizes = [2, 128], strides = [1, 1]} : vector<16x128xf32> to vector<2x128xf32>
    %cst_30 = arith.constant dense<0.000000e+00> : vector<2x128xf32>
    %78 = tpu.matmul %76, %20, %cst_30 {dimension_numbers = #tpu.dot_dimension_numbers<[1], [0], [0], [1], [0, 0, 1, 1], [], []>} : vector<2x32xf32>, vector<32x128xf32>, vector<2x128xf32> -> vector<2x128xf32>
    %79 = arith.addf %77, %78 : vector<2x128xf32>
    %80 = arith.negf %79 : vector<2x128xf32>
    %81 = math.exp %80 : vector<2x128xf32>
    %cst_31 = arith.constant 1.000000e+00 : f32
    %82 = vector.broadcast %cst_31 : f32 to vector<2x128xf32>
    %83 = arith.addf %82, %81 : vector<2x128xf32>
    %84 = arith.divf %82, %83 : vector<2x128xf32>
    %85 = vector.extract_strided_slice %84 {offsets = [0, 0], sizes = [2, 32], strides = [1, 1]} : vector<2x128xf32> to vector<2x32xf32>
    %86 = vector.extract_strided_slice %84 {offsets = [0, 32], sizes = [2, 32], strides = [1, 1]} : vector<2x128xf32> to vector<2x32xf32>
    %87 = vector.extract_strided_slice %84 {offsets = [0, 96], sizes = [2, 32], strides = [1, 1]} : vector<2x128xf32> to vector<2x32xf32>
    %88 = vector.extract_strided_slice %79 {offsets = [0, 64], sizes = [2, 32], strides = [1, 1]} : vector<2x128xf32> to vector<2x32xf32>
    %89 = math.tanh %88 : vector<2x32xf32>
    %90 = arith.mulf %86, %74 : vector<2x32xf32>
    %91 = arith.mulf %85, %89 : vector<2x32xf32>
    %92 = arith.addf %90, %91 : vector<2x32xf32>
    %93 = math.tanh %92 : vector<2x32xf32>
    %94 = arith.mulf %87, %93 : vector<2x32xf32>
    %95 = vector.extract_strided_slice %19 {offsets = [8, 0], sizes = [2, 128], strides = [1, 1]} : vector<16x128xf32> to vector<2x128xf32>
    %cst_32 = arith.constant dense<0.000000e+00> : vector<2x128xf32>
    %96 = tpu.matmul %94, %20, %cst_32 {dimension_numbers = #tpu.dot_dimension_numbers<[1], [0], [0], [1], [0, 0, 1, 1], [], []>} : vector<2x32xf32>, vector<32x128xf32>, vector<2x128xf32> -> vector<2x128xf32>
    %97 = arith.addf %95, %96 : vector<2x128xf32>
    %98 = arith.negf %97 : vector<2x128xf32>
    %99 = math.exp %98 : vector<2x128xf32>
    %cst_33 = arith.constant 1.000000e+00 : f32
    %100 = vector.broadcast %cst_33 : f32 to vector<2x128xf32>
    %101 = arith.addf %100, %99 : vector<2x128xf32>
    %102 = arith.divf %100, %101 : vector<2x128xf32>
    %103 = vector.extract_strided_slice %102 {offsets = [0, 0], sizes = [2, 32], strides = [1, 1]} : vector<2x128xf32> to vector<2x32xf32>
    %104 = vector.extract_strided_slice %102 {offsets = [0, 32], sizes = [2, 32], strides = [1, 1]} : vector<2x128xf32> to vector<2x32xf32>
    %105 = vector.extract_strided_slice %102 {offsets = [0, 96], sizes = [2, 32], strides = [1, 1]} : vector<2x128xf32> to vector<2x32xf32>
    %106 = vector.extract_strided_slice %97 {offsets = [0, 64], sizes = [2, 32], strides = [1, 1]} : vector<2x128xf32> to vector<2x32xf32>
    %107 = math.tanh %106 : vector<2x32xf32>
    %108 = arith.mulf %104, %92 : vector<2x32xf32>
    %109 = arith.mulf %103, %107 : vector<2x32xf32>
    %110 = arith.addf %108, %109 : vector<2x32xf32>
    %111 = math.tanh %110 : vector<2x32xf32>
    %112 = arith.mulf %105, %111 : vector<2x32xf32>
    %113 = vector.extract_strided_slice %19 {offsets = [10, 0], sizes = [2, 128], strides = [1, 1]} : vector<16x128xf32> to vector<2x128xf32>
    %cst_34 = arith.constant dense<0.000000e+00> : vector<2x128xf32>
    %114 = tpu.matmul %112, %20, %cst_34 {dimension_numbers = #tpu.dot_dimension_numbers<[1], [0], [0], [1], [0, 0, 1, 1], [], []>} : vector<2x32xf32>, vector<32x128xf32>, vector<2x128xf32> -> vector<2x128xf32>
    %115 = arith.addf %113, %114 : vector<2x128xf32>
    %116 = arith.negf %115 : vector<2x128xf32>
    %117 = math.exp %116 : vector<2x128xf32>
    %cst_35 = arith.constant 1.000000e+00 : f32
    %118 = vector.broadcast %cst_35 : f32 to vector<2x128xf32>
    %119 = arith.addf %118, %117 : vector<2x128xf32>
    %120 = arith.divf %118, %119 : vector<2x128xf32>
    %121 = vector.extract_strided_slice %120 {offsets = [0, 0], sizes = [2, 32], strides = [1, 1]} : vector<2x128xf32> to vector<2x32xf32>
    %122 = vector.extract_strided_slice %120 {offsets = [0, 32], sizes = [2, 32], strides = [1, 1]} : vector<2x128xf32> to vector<2x32xf32>
    %123 = vector.extract_strided_slice %120 {offsets = [0, 96], sizes = [2, 32], strides = [1, 1]} : vector<2x128xf32> to vector<2x32xf32>
    %124 = vector.extract_strided_slice %115 {offsets = [0, 64], sizes = [2, 32], strides = [1, 1]} : vector<2x128xf32> to vector<2x32xf32>
    %125 = math.tanh %124 : vector<2x32xf32>
    %126 = arith.mulf %122, %110 : vector<2x32xf32>
    %127 = arith.mulf %121, %125 : vector<2x32xf32>
    %128 = arith.addf %126, %127 : vector<2x32xf32>
    %129 = math.tanh %128 : vector<2x32xf32>
    %130 = arith.mulf %123, %129 : vector<2x32xf32>
    %131 = vector.extract_strided_slice %19 {offsets = [12, 0], sizes = [2, 128], strides = [1, 1]} : vector<16x128xf32> to vector<2x128xf32>
    %cst_36 = arith.constant dense<0.000000e+00> : vector<2x128xf32>
    %132 = tpu.matmul %130, %20, %cst_36 {dimension_numbers = #tpu.dot_dimension_numbers<[1], [0], [0], [1], [0, 0, 1, 1], [], []>} : vector<2x32xf32>, vector<32x128xf32>, vector<2x128xf32> -> vector<2x128xf32>
    %133 = arith.addf %131, %132 : vector<2x128xf32>
    %134 = arith.negf %133 : vector<2x128xf32>
    %135 = math.exp %134 : vector<2x128xf32>
    %cst_37 = arith.constant 1.000000e+00 : f32
    %136 = vector.broadcast %cst_37 : f32 to vector<2x128xf32>
    %137 = arith.addf %136, %135 : vector<2x128xf32>
    %138 = arith.divf %136, %137 : vector<2x128xf32>
    %139 = vector.extract_strided_slice %138 {offsets = [0, 0], sizes = [2, 32], strides = [1, 1]} : vector<2x128xf32> to vector<2x32xf32>
    %140 = vector.extract_strided_slice %138 {offsets = [0, 32], sizes = [2, 32], strides = [1, 1]} : vector<2x128xf32> to vector<2x32xf32>
    %141 = vector.extract_strided_slice %138 {offsets = [0, 96], sizes = [2, 32], strides = [1, 1]} : vector<2x128xf32> to vector<2x32xf32>
    %142 = vector.extract_strided_slice %133 {offsets = [0, 64], sizes = [2, 32], strides = [1, 1]} : vector<2x128xf32> to vector<2x32xf32>
    %143 = math.tanh %142 : vector<2x32xf32>
    %144 = arith.mulf %140, %128 : vector<2x32xf32>
    %145 = arith.mulf %139, %143 : vector<2x32xf32>
    %146 = arith.addf %144, %145 : vector<2x32xf32>
    %147 = math.tanh %146 : vector<2x32xf32>
    %148 = arith.mulf %141, %147 : vector<2x32xf32>
    %149 = vector.extract_strided_slice %19 {offsets = [14, 0], sizes = [2, 128], strides = [1, 1]} : vector<16x128xf32> to vector<2x128xf32>
    %cst_38 = arith.constant dense<0.000000e+00> : vector<2x128xf32>
    %150 = tpu.matmul %148, %20, %cst_38 {dimension_numbers = #tpu.dot_dimension_numbers<[1], [0], [0], [1], [0, 0, 1, 1], [], []>} : vector<2x32xf32>, vector<32x128xf32>, vector<2x128xf32> -> vector<2x128xf32>
    %151 = arith.addf %149, %150 : vector<2x128xf32>
    %152 = arith.negf %151 : vector<2x128xf32>
    %153 = math.exp %152 : vector<2x128xf32>
    %cst_39 = arith.constant 1.000000e+00 : f32
    %154 = vector.broadcast %cst_39 : f32 to vector<2x128xf32>
    %155 = arith.addf %154, %153 : vector<2x128xf32>
    %156 = arith.divf %154, %155 : vector<2x128xf32>
    %157 = vector.extract_strided_slice %156 {offsets = [0, 0], sizes = [2, 32], strides = [1, 1]} : vector<2x128xf32> to vector<2x32xf32>
    %158 = vector.extract_strided_slice %156 {offsets = [0, 32], sizes = [2, 32], strides = [1, 1]} : vector<2x128xf32> to vector<2x32xf32>
    %159 = vector.extract_strided_slice %156 {offsets = [0, 96], sizes = [2, 32], strides = [1, 1]} : vector<2x128xf32> to vector<2x32xf32>
    %160 = vector.extract_strided_slice %151 {offsets = [0, 64], sizes = [2, 32], strides = [1, 1]} : vector<2x128xf32> to vector<2x32xf32>
    %161 = math.tanh %160 : vector<2x32xf32>
    %162 = arith.mulf %158, %146 : vector<2x32xf32>
    %163 = arith.mulf %157, %161 : vector<2x32xf32>
    %164 = arith.addf %162, %163 : vector<2x32xf32>
    %165 = math.tanh %164 : vector<2x32xf32>
    %166 = arith.mulf %159, %165 : vector<2x32xf32>
    %167 = vector.extract_strided_slice %5 {offsets = [14, 0], sizes = [2, 32], strides = [1, 1]} : vector<16x32xf32> to vector<2x32xf32>
    %168 = vector.extract_strided_slice %11 {offsets = [14, 0], sizes = [2, 32], strides = [1, 1]} : vector<16x32xf32> to vector<2x32xf32>
    %c0_40 = arith.constant 0 : index
    %c0_41 = arith.constant 0 : index
    %169 = vector.load %arg11[%c0_40, %c0_41] : memref<32x128xf32, #tpu.memory_space<vmem>>, vector<32x128xf32>
    %cst_42 = arith.constant dense<0.000000e+00> : vector<2x128xf32>
    %170 = tpu.matmul %167, %169, %cst_42 {dimension_numbers = #tpu.dot_dimension_numbers<[1], [0], [0], [1], [0, 0, 1, 1], [], []>} : vector<2x32xf32>, vector<32x128xf32>, vector<2x128xf32> -> vector<2x128xf32>
    %c0_43 = arith.constant 0 : index
    %c0_44 = arith.constant 0 : index
    %171 = vector.load %arg12[%c0_43, %c0_44] : memref<32x128xf32, #tpu.memory_space<vmem>>, vector<32x128xf32>
    %cst_45 = arith.constant dense<0.000000e+00> : vector<2x128xf32>
    %172 = tpu.matmul %168, %171, %cst_45 {dimension_numbers = #tpu.dot_dimension_numbers<[1], [0], [0], [1], [0, 0, 1, 1], [], []>} : vector<2x32xf32>, vector<32x128xf32>, vector<2x128xf32> -> vector<2x128xf32>
    %173 = arith.addf %170, %172 : vector<2x128xf32>
    %c0_46 = arith.constant 0 : index
    %c0_47 = arith.constant 0 : index
    %174 = vector.load %arg14[%c0_46, %c0_47] : memref<1x128xf32, #tpu.memory_space<vmem>>, vector<1x128xf32>
    %175 = vector.broadcast %174 : vector<1x128xf32> to vector<2x128xf32>
    %176 = arith.addf %173, %175 : vector<2x128xf32>
    %c0_48 = arith.constant 0 : index
    %c0_49 = arith.constant 0 : index
    %177 = vector.load %arg13[%c0_48, %c0_49] : memref<32x128xf32, #tpu.memory_space<vmem>>, vector<32x128xf32>
    %cst_50 = arith.constant dense<0.000000e+00> : vector<2x128xf32>
    %178 = tpu.matmul %166, %177, %cst_50 {dimension_numbers = #tpu.dot_dimension_numbers<[1], [0], [0], [1], [0, 0, 1, 1], [], []>} : vector<2x32xf32>, vector<32x128xf32>, vector<2x128xf32> -> vector<2x128xf32>
    %179 = arith.addf %176, %178 : vector<2x128xf32>
    %180 = arith.negf %179 : vector<2x128xf32>
    %181 = math.exp %180 : vector<2x128xf32>
    %cst_51 = arith.constant 1.000000e+00 : f32
    %182 = vector.broadcast %cst_51 : f32 to vector<2x128xf32>
    %183 = arith.addf %182, %181 : vector<2x128xf32>
    %184 = arith.divf %182, %183 : vector<2x128xf32>
    %185 = vector.extract_strided_slice %184 {offsets = [0, 0], sizes = [2, 32], strides = [1, 1]} : vector<2x128xf32> to vector<2x32xf32>
    %186 = vector.extract_strided_slice %184 {offsets = [0, 32], sizes = [2, 32], strides = [1, 1]} : vector<2x128xf32> to vector<2x32xf32>
    %187 = vector.extract_strided_slice %184 {offsets = [0, 96], sizes = [2, 32], strides = [1, 1]} : vector<2x128xf32> to vector<2x32xf32>
    %188 = vector.extract_strided_slice %179 {offsets = [0, 64], sizes = [2, 32], strides = [1, 1]} : vector<2x128xf32> to vector<2x32xf32>
    %189 = math.tanh %188 : vector<2x32xf32>
    %190 = arith.mulf %186, %164 : vector<2x32xf32>
    %191 = arith.mulf %185, %189 : vector<2x32xf32>
    %192 = arith.addf %190, %191 : vector<2x32xf32>
    %193 = math.tanh %192 : vector<2x32xf32>
    %194 = arith.mulf %187, %193 : vector<2x32xf32>
    %cst_52 = arith.constant dense<0.000000e+00> : vector<2x128xf32>
    %195 = tpu.matmul %194, %177, %cst_52 {dimension_numbers = #tpu.dot_dimension_numbers<[1], [0], [0], [1], [0, 0, 1, 1], [], []>} : vector<2x32xf32>, vector<32x128xf32>, vector<2x128xf32> -> vector<2x128xf32>
    %196 = arith.addf %176, %195 : vector<2x128xf32>
    %197 = arith.negf %196 : vector<2x128xf32>
    %198 = math.exp %197 : vector<2x128xf32>
    %cst_53 = arith.constant 1.000000e+00 : f32
    %199 = vector.broadcast %cst_53 : f32 to vector<2x128xf32>
    %200 = arith.addf %199, %198 : vector<2x128xf32>
    %201 = arith.divf %199, %200 : vector<2x128xf32>
    %202 = vector.extract_strided_slice %201 {offsets = [0, 0], sizes = [2, 32], strides = [1, 1]} : vector<2x128xf32> to vector<2x32xf32>
    %203 = vector.extract_strided_slice %201 {offsets = [0, 32], sizes = [2, 32], strides = [1, 1]} : vector<2x128xf32> to vector<2x32xf32>
    %204 = vector.extract_strided_slice %201 {offsets = [0, 96], sizes = [2, 32], strides = [1, 1]} : vector<2x128xf32> to vector<2x32xf32>
    %205 = vector.extract_strided_slice %196 {offsets = [0, 64], sizes = [2, 32], strides = [1, 1]} : vector<2x128xf32> to vector<2x32xf32>
    %206 = math.tanh %205 : vector<2x32xf32>
    %207 = arith.mulf %203, %192 : vector<2x32xf32>
    %208 = arith.mulf %202, %206 : vector<2x32xf32>
    %209 = arith.addf %207, %208 : vector<2x32xf32>
    %210 = math.tanh %209 : vector<2x32xf32>
    %211 = arith.mulf %204, %210 : vector<2x32xf32>
    %c0_54 = arith.constant 0 : index
    %c0_55 = arith.constant 0 : index
    %212 = vector.load %arg15[%c0_54, %c0_55] : memref<32x8xf32, #tpu.memory_space<vmem>>, vector<32x8xf32>
    %cst_56 = arith.constant dense<0.000000e+00> : vector<2x8xf32>
    %213 = tpu.matmul %211, %212, %cst_56 {dimension_numbers = #tpu.dot_dimension_numbers<[1], [0], [0], [1], [0, 0, 1, 1], [], []>} : vector<2x32xf32>, vector<32x8xf32>, vector<2x8xf32> -> vector<2x8xf32>
    %c0_57 = arith.constant 0 : index
    %c0_58 = arith.constant 0 : index
    %214 = vector.load %arg16[%c0_57, %c0_58] : memref<1x8xf32, #tpu.memory_space<vmem>>, vector<1x8xf32>
    %215 = vector.broadcast %214 : vector<1x8xf32> to vector<2x8xf32>
    %216 = arith.addf %213, %215 : vector<2x8xf32>
    %c0_59 = arith.constant 0 : index
    %c0_60 = arith.constant 0 : index
    %217 = vector.load %arg17[%c0_59, %c0_60] : memref<2x8xf32, #tpu.memory_space<vmem>>, vector<2x8xf32>
    tpu.vector_store %arg17[%c0_59, %c0_60], %216 {strides = array<i32>} : memref<2x8xf32, #tpu.memory_space<vmem>>, vector<2x8xf32>,
    return
  }
  func.func @transform_0(%arg0: i32) -> (i32, i32) {
    %c0_i32 = arith.constant 0 : i32
    %c0_i32_0 = arith.constant 0 : i32
    %c0_i32_1 = arith.constant 0 : i32
    return %c0_i32, %c0_i32_0 : i32, i32
  }
  func.func @transform_1(%arg0: i32) -> (i32, i32) {
    %c0_i32 = arith.constant 0 : i32
    %c0_i32_0 = arith.constant 0 : i32
    %c0_i32_1 = arith.constant 0 : i32
    return %c0_i32, %c0_i32_0 : i32, i32
  }
  func.func @transform_2(%arg0: i32) -> (i32, i32) {
    %c0_i32 = arith.constant 0 : i32
    %c0_i32_0 = arith.constant 0 : i32
    %c0_i32_1 = arith.constant 0 : i32
    return %c0_i32, %c0_i32_0 : i32, i32
  }
  func.func @transform_3(%arg0: i32) -> (i32, i32) {
    %c0_i32 = arith.constant 0 : i32
    %c0_i32_0 = arith.constant 0 : i32
    %c0_i32_1 = arith.constant 0 : i32
    return %c0_i32, %c0_i32_0 : i32, i32
  }
  func.func @transform_4(%arg0: i32) -> (i32, i32) {
    %c0_i32 = arith.constant 0 : i32
    %c0_i32_0 = arith.constant 0 : i32
    %c0_i32_1 = arith.constant 0 : i32
    return %c0_i32, %c0_i32_0 : i32, i32
  }
  func.func @transform_5(%arg0: i32) -> (i32, i32) {
    %c0_i32 = arith.constant 0 : i32
    %c0_i32_0 = arith.constant 0 : i32
    %c0_i32_1 = arith.constant 0 : i32
    return %c0_i32, %c0_i32_0 : i32, i32
  }
  func.func @transform_6(%arg0: i32) -> (i32, i32) {
    %c0_i32 = arith.constant 0 : i32
    %c0_i32_0 = arith.constant 0 : i32
    %c0_i32_1 = arith.constant 0 : i32
    return %c0_i32, %c0_i32_0 : i32, i32
  }
  func.func @transform_7(%arg0: i32) -> (i32, i32) {
    %c0_i32 = arith.constant 0 : i32
    %c0_i32_0 = arith.constant 0 : i32
    %c0_i32_1 = arith.constant 0 : i32
    return %c0_i32, %c0_i32_0 : i32, i32
  }
  func.func @transform_8(%arg0: i32) -> (i32, i32) {
    %c0_i32 = arith.constant 0 : i32
    %c0_i32_0 = arith.constant 0 : i32
    %c0_i32_1 = arith.constant 0 : i32
    return %c0_i32, %c0_i32_0 : i32, i32
  }
  func.func @transform_9(%arg0: i32) -> (i32, i32) {
    %c0_i32 = arith.constant 0 : i32
    %c0_i32_0 = arith.constant 0 : i32
    %c0_i32_1 = arith.constant 0 : i32
    return %c0_i32, %c0_i32_0 : i32, i32
  }
  func.func @transform_10(%arg0: i32) -> (i32, i32) {
    %c0_i32 = arith.constant 0 : i32
    %c0_i32_0 = arith.constant 0 : i32
    %c0_i32_1 = arith.constant 0 : i32
    return %c0_i32, %c0_i32_0 : i32, i32
  }
  func.func @transform_11(%arg0: i32) -> (i32, i32) {
    %c0_i32 = arith.constant 0 : i32
    %c0_i32_0 = arith.constant 0 : i32
    %c0_i32_1 = arith.constant 0 : i32
    return %c0_i32, %c0_i32_0 : i32, i32
  }
  func.func @transform_12(%arg0: i32) -> (i32, i32) {
    %c0_i32 = arith.constant 0 : i32
    %c0_i32_0 = arith.constant 0 : i32
    %c0_i32_1 = arith.constant 0 : i32
    return %c0_i32, %c0_i32_0 : i32, i32
  }
  func.func @transform_13(%arg0: i32) -> (i32, i32) {
    %c0_i32 = arith.constant 0 : i32
    %c0_i32_0 = arith.constant 0 : i32
    %c0_i32_1 = arith.constant 0 : i32
    return %c0_i32, %c0_i32_0 : i32, i32
  }
  func.func @transform_14(%arg0: i32) -> (i32, i32) {
    %c0_i32 = arith.constant 0 : i32
    %c0_i32_0 = arith.constant 0 : i32
    %c0_i32_1 = arith.constant 0 : i32
    return %c0_i32, %c0_i32_0 : i32, i32
  }
  func.func @transform_15(%arg0: i32) -> (i32, i32) {
    %c0_i32 = arith.constant 0 : i32
    %c0_i32_0 = arith.constant 0 : i32
    %c0_i32_1 = arith.constant 0 : i32
    return %c0_i32, %c0_i32_0 : i32, i32
  }
  func.func @transform_16(%arg0: i32) -> (i32, i32) {
    %c0_i32 = arith.constant 0 : i32
    %c0_i32_0 = arith.constant 0 : i32
    %c0_i32_1 = arith.constant 0 : i32
    return %c0_i32, %c0_i32_0 : i32, i32
  }
}

</mosaic_0001>

<llo_original>
// kernel: rulstm_forward.1
$region0: #{rulstm_forward.1}
  #allocation0 [shape = 'u32[]', space=smem, size = 0x4, offset = 0x4, fixed_abs, tag = 'smem constant byte address 0x4 - core index']
  #allocation1 [shape = 'u32[144,128]{1,0:T(1,128)}', space=vmem, size = 0x12000, scoped, tag = 'internal scratch']
  %s0 = inlined_call_operand.vmem [shape: f32[16,2048], index: 0, kind: input, shape index: {}]
  %s1 = inlined_call_operand.vmem [shape: f32[16,128], index: 1, kind: input, shape index: {}]
  %s2 = inlined_call_operand.vmem [shape: f32[2048,32], index: 2, kind: input, shape index: {}]
  %s3 = inlined_call_operand.vmem [shape: f32[1,32], index: 3, kind: input, shape index: {}]
  %s4 = inlined_call_operand.vmem [shape: f32[128,32], index: 4, kind: input, shape index: {}]
  %s5 = inlined_call_operand.vmem [shape: f32[1,32], index: 5, kind: input, shape index: {}]
  %s6 = inlined_call_operand.vmem [shape: f32[32,128], index: 6, kind: input, shape index: {}]
  %s7 = inlined_call_operand.vmem [shape: f32[32,128], index: 7, kind: input, shape index: {}]
  %s8 = inlined_call_operand.vmem [shape: f32[32,128], index: 8, kind: input, shape index: {}]
  %s9 = inlined_call_operand.vmem [shape: f32[1,128], index: 9, kind: input, shape index: {}]
  %s10 = inlined_call_operand.vmem [shape: f32[32,128], index: 10, kind: input, shape index: {}]
  %s11 = inlined_call_operand.vmem [shape: f32[32,128], index: 11, kind: input, shape index: {}]
  %s12 = inlined_call_operand.vmem [shape: f32[32,128], index: 12, kind: input, shape index: {}]
  %s13 = inlined_call_operand.vmem [shape: f32[1,128], index: 13, kind: input, shape index: {}]
  %s14 = inlined_call_operand.vmem [shape: f32[32,8], index: 14, kind: input, shape index: {}]
  %s15 = inlined_call_operand.vmem [shape: f32[1,8], index: 15, kind: input, shape index: {}]
  %s16 = inlined_call_operand.hbm [shape: f32[2,8], index: 16, kind: output, shape index: {}]
  %s17 = sld [smem:[#allocation0]]
  $region74: #{rulstm_forward.1} parent=0
    _
  %s19 = ssub.s32 1, %s17
  %s20 = scalar_select 0, %s19, %s17
  $region1: #{rulstm_forward.1} parent=0
    #allocation2 [shape = 'u8[1024]{0}', space=vmem, size = 0x400, scoped, tag = 'output window, operand 0, single buffered']
    #allocation3 [shape = 's32[1]{0}', space=sflag, size = 0x4, scoped, tag = 'scoped memory for rulstm_forward.1']
    %21 = vsyncpa [#allocation3], 0
    // Predicated region
    $region2: #{rulstm_forward.1} parent=1 // pred_check
      _
    $region3: #{rulstm_forward.1} parent=1 // pred_check_branch
      %23 = sbr.rel (0) target = $region5
    $region4: #{rulstm_forward.1} parent=1 // pred_region
      _
    $region5: #{rulstm_forward.1} parent=1 // pred_fallthru
      _
    // Predicated region
    $region6: #{rulstm_forward.1} parent=1 // pred_check
      _
    $region7: #{rulstm_forward.1} parent=1 // pred_check_branch
      %25 = sbr.rel (0) target = $region9
    $region8: #{rulstm_forward.1} parent=1 // pred_region
      _
    $region9: #{rulstm_forward.1} parent=1 // pred_fallthru
      _
    // Predicated region
    $region10: #{rulstm_forward.1} parent=1 // pred_check
      _
    $region11: #{rulstm_forward.1} parent=1 // pred_check_branch
      %27 = sbr.rel (0) target = $region13
    $region12: #{rulstm_forward.1} parent=1 // pred_region
      _
    $region13: #{rulstm_forward.1} parent=1 // pred_fallthru
      _
    // Predicated region
    $region14: #{rulstm_forward.1} parent=1 // pred_check
      _
    $region15: #{rulstm_forward.1} parent=1 // pred_check_branch
      %29 = sbr.rel (0) target = $region17
    $region16: #{rulstm_forward.1} parent=1 // pred_region
      _
    $region17: #{rulstm_forward.1} parent=1 // pred_fallthru
      _
    // Predicated region
    $region18: #{rulstm_forward.1} parent=1 // pred_check
      _
    $region19: #{rulstm_forward.1} parent=1 // pred_check_branch
      %31 = sbr.rel (0) target = $region21
    $region20: #{rulstm_forward.1} parent=1 // pred_region
      _
    $region21: #{rulstm_forward.1} parent=1 // pred_fallthru
      _
    // Predicated region
    $region22: #{rulstm_forward.1} parent=1 // pred_check
      _
    $region23: #{rulstm_forward.1} parent=1 // pred_check_branch
      %33 = sbr.rel (0) target = $region25
    $region24: #{rulstm_forward.1} parent=1 // pred_region
      _
    $region25: #{rulstm_forward.1} parent=1 // pred_fallthru
      _
    // Predicated region
    $region26: #{rulstm_forward.1} parent=1 // pred_check
      _
    $region27: #{rulstm_forward.1} parent=1 // pred_check_branch
      %35 = sbr.rel (0) target = $region29
    $region28: #{rulstm_forward.1} parent=1 // pred_region
      _
    $region29: #{rulstm_forward.1} parent=1 // pred_fallthru
      _
    // Predicated region
    $region30: #{rulstm_forward.1} parent=1 // pred_check
      _
    $region31: #{rulstm_forward.1} parent=1 // pred_check_branch
      %37 = sbr.rel (0) target = $region33
    $region32: #{rulstm_forward.1} parent=1 // pred_region
      _
    $region33: #{rulstm_forward.1} parent=1 // pred_fallthru
      _
    // Predicated region
    $region34: #{rulstm_forward.1} parent=1 // pred_check
      _
    $region35: #{rulstm_forward.1} parent=1 // pred_check_branch
      %39 = sbr.rel (0) target = $region37
    $region36: #{rulstm_forward.1} parent=1 // pred_region
      _
    $region37: #{rulstm_forward.1} parent=1 // pred_fallthru
      _
    // Predicated region
    $region38: #{rulstm_forward.1} parent=1 // pred_check
      _
    $region39: #{rulstm_forward.1} parent=1 // pred_check_branch
      %41 = sbr.rel (0) target = $region41
    $region40: #{rulstm_forward.1} parent=1 // pred_region
      _
    $region41: #{rulstm_forward.1} parent=1 // pred_fallthru
      _
    // Predicated region
    $region42: #{rulstm_forward.1} parent=1 // pred_check
      _
    $region43: #{rulstm_forward.1} parent=1 // pred_check_branch
      %43 = sbr.rel (0) target = $region45
    $region44: #{rulstm_forward.1} parent=1 // pred_region
      _
    $region45: #{rulstm_forward.1} parent=1 // pred_fallthru
      _
    // Predicated region
    $region46: #{rulstm_forward.1} parent=1 // pred_check
      _
    $region47: #{rulstm_forward.1} parent=1 // pred_check_branch
      %45 = sbr.rel (0) target = $region49
    $region48: #{rulstm_forward.1} parent=1 // pred_region
      _
    $region49: #{rulstm_forward.1} parent=1 // pred_fallthru
      _
    // Predicated region
    $region50: #{rulstm_forward.1} parent=1 // pred_check
      _
    $region51: #{rulstm_forward.1} parent=1 // pred_check_branch
      %47 = sbr.rel (0) target = $region53
    $region52: #{rulstm_forward.1} parent=1 // pred_region
      _
    $region53: #{rulstm_forward.1} parent=1 // pred_fallthru
      _
    // Predicated region
    $region54: #{rulstm_forward.1} parent=1 // pred_check
      _
    $region55: #{rulstm_forward.1} parent=1 // pred_check_branch
      %49 = sbr.rel (0) target = $region57
    $region56: #{rulstm_forward.1} parent=1 // pred_region
      _
    $region57: #{rulstm_forward.1} parent=1 // pred_fallthru
      _
    // Predicated region
    $region58: #{rulstm_forward.1} parent=1 // pred_check
      _
    $region59: #{rulstm_forward.1} parent=1 // pred_check_branch
      %51 = sbr.rel (0) target = $region61
    $region60: #{rulstm_forward.1} parent=1 // pred_region
      _
    $region61: #{rulstm_forward.1} parent=1 // pred_fallthru
      _
    // Predicated region
    $region62: #{rulstm_forward.1} parent=1 // pred_check
      _
    $region63: #{rulstm_forward.1} parent=1 // pred_check_branch
      %53 = sbr.rel (0) target = $region65
    $region64: #{rulstm_forward.1} parent=1 // pred_region
      _
    $region65: #{rulstm_forward.1} parent=1 // pred_fallthru
      _
    %v54 = vld [vmem:[%s0] sm:$0xff]
    %v55 = vld [vmem:[%s0 + $0x8] sm:$0xff]
    %v56 = vld [vmem:[%s0 + $0x10] sm:$0xff]
    %v57 = vld [vmem:[%s0 + $0x18] sm:$0xff]
    %v58 = vld [vmem:[%s0 + $0x20] sm:$0xff]
    %v59 = vld [vmem:[%s0 + $0x28] sm:$0xff]
    %v60 = vld [vmem:[%s0 + $0x30] sm:$0xff]
    %v61 = vld [vmem:[%s0 + $0x38] sm:$0xff]
    %v62 = vld [vmem:[%s0 + $0x40] sm:$0xff]
    %v63 = vld [vmem:[%s0 + $0x48] sm:$0xff]
    %v64 = vld [vmem:[%s0 + $0x50] sm:$0xff]
    %v65 = vld [vmem:[%s0 + $0x58] sm:$0xff]
    %v66 = vld [vmem:[%s0 + $0x60] sm:$0xff]
    %v67 = vld [vmem:[%s0 + $0x68] sm:$0xff]
    %v68 = vld [vmem:[%s0 + $0x70] sm:$0xff]
    %v69 = vld [vmem:[%s0 + $0x78] sm:$0xff]
    %v70 = vld [vmem:[%s0 + $0x80] sm:$0xff]
    %v71 = vld [vmem:[%s0 + $0x88] sm:$0xff]
    %v72 = vld [vmem:[%s0 + $0x90] sm:$0xff]
    %v73 = vld [vmem:[%s0 + $0x98] sm:$0xff]
    %v74 = vld [vmem:[%s0 + $0xa0] sm:$0xff]
    %v75 = vld [vmem:[%s0 + $0xa8] sm:$0xff]
    %v76 = vld [vmem:[%s0 + $0xb0] sm:$0xff]
    %v77 = vld [vmem:[%s0 + $0xb8] sm:$0xff]
    %v78 = vld [vmem:[%s0 + $0xc0] sm:$0xff]
    %v79 = vld [vmem:[%s0 + $0xc8] sm:$0xff]
    %v80 = vld [vmem:[%s0 + $0xd0] sm:$0xff]
    %v81 = vld [vmem:[%s0 + $0xd8] sm:$0xff]
    %v82 = vld [vmem:[%s0 + $0xe0] sm:$0xff]
    %v83 = vld [vmem:[%s0 + $0xe8] sm:$0xff]
    %v84 = vld [vmem:[%s0 + $0xf0] sm:$0xff]
    %v85 = vld [vmem:[%s0 + $0xf8] sm:$0xff]
    %v86 = vld [vmem:[%s2] sm:$0xff]
    %v87 = vld [vmem:[%s2 + $0x8] sm:$0xff]
    %v88 = vld [vmem:[%s2 + $0x10] sm:$0xff]
    %v89 = vld [vmem:[%s2 + $0x18] sm:$0xff]
    %v90 = vld [vmem:[%s2 + $0x20] sm:$0xff]
    %v91 = vld [vmem:[%s2 + $0x28] sm:$0xff]
    %v92 = vld [vmem:[%s2 + $0x30] sm:$0xff]
    %v93 = vld [vmem:[%s2 + $0x38] sm:$0xff]
    %v94 = vld [vmem:[%s2 + $0x40] sm:$0xff]
    %v95 = vld [vmem:[%s2 + $0x48] sm:$0xff]
    %v96 = vld [vmem:[%s2 + $0x50] sm:$0xff]
    %v97 = vld [vmem:[%s2 + $0x58] sm:$0xff]
    %v98 = vld [vmem:[%s2 + $0x60] sm:$0xff]
    %v99 = vld [vmem:[%s2 + $0x68] sm:$0xff]
    %v100 = vld [vmem:[%s2 + $0x70] sm:$0xff]
    %v101 = vld [vmem:[%s2 + $0x78] sm:$0xff]
    %v102 = vld [vmem:[%s2 + $0x80] sm:$0xff]
    %v103 = vld [vmem:[%s2 + $0x88] sm:$0xff]
    %v104 = vld [vmem:[%s2 + $0x90] sm:$0xff]
    %v105 = vld [vmem:[%s2 + $0x98] sm:$0xff]
    %v106 = vld [vmem:[%s2 + $0xa0] sm:$0xff]
    %v107 = vld [vmem:[%s2 + $0xa8] sm:$0xff]
    %v108 = vld [vmem:[%s2 + $0xb0] sm:$0xff]
    %v109 = vld [vmem:[%s2 + $0xb8] sm:$0xff]
    %v110 = vld [vmem:[%s2 + $0xc0] sm:$0xff]
    %v111 = vld [vmem:[%s2 + $0xc8] sm:$0xff]
    %v112 = vld [vmem:[%s2 + $0xd0] sm:$0xff]
    %v113 = vld [vmem:[%s2 + $0xd8] sm:$0xff]
    %v114 = vld [vmem:[%s2 + $0xe0] sm:$0xff]
    %v115 = vld [vmem:[%s2 + $0xe8] sm:$0xff]
    %v116 = vld [vmem:[%s2 + $0xf0] sm:$0xff]
    %v117 = vld [vmem:[%s2 + $0xf8] sm:$0xff]
    %v118 = vld [vmem:[%s2 + $0x100] sm:$0xff]
    %v119 = vld [vmem:[%s2 + $0x108] sm:$0xff]
    %v120 = vld [vmem:[%s2 + $0x110] sm:$0xff]
    %v121 = vld [vmem:[%s2 + $0x118] sm:$0xff]
    %v122 = vld [vmem:[%s2 + $0x120] sm:$0xff]
    %v123 = vld [vmem:[%s2 + $0x128] sm:$0xff]
    %v124 = vld [vmem:[%s2 + $0x130] sm:$0xff]
    %v125 = vld [vmem:[%s2 + $0x138] sm:$0xff]
    %v126 = vld [vmem:[%s2 + $0x140] sm:$0xff]
    %v127 = vld [vmem:[%s2 + $0x148] sm:$0xff]
    %v128 = vld [vmem:[%s2 + $0x150] sm:$0xff]
    %v129 = vld [vmem:[%s2 + $0x158] sm:$0xff]
    %v130 = vld [vmem:[%s2 + $0x160] sm:$0xff]
    %v131 = vld [vmem:[%s2 + $0x168] sm:$0xff]
    %v132 = vld [vmem:[%s2 + $0x170] sm:$0xff]
    %v133 = vld [vmem:[%s2 + $0x178] sm:$0xff]
    %v134 = vld [vmem:[%s2 + $0x180] sm:$0xff]
    %v135 = vld [vmem:[%s2 + $0x188] sm:$0xff]
    %v136 = vld [vmem:[%s2 + $0x190] sm:$0xff]
    %v137 = vld [vmem:[%s2 + $0x198] sm:$0xff]
    %v138 = vld [vmem:[%s2 + $0x1a0] sm:$0xff]
    %v139 = vld [vmem:[%s2 + $0x1a8] sm:$0xff]
    %v140 = vld [vmem:[%s2 + $0x1b0] sm:$0xff]
    %v141 = vld [vmem:[%s2 + $0x1b8] sm:$0xff]
    %v142 = vld [vmem:[%s2 + $0x1c0] sm:$0xff]
    %v143 = vld [vmem:[%s2 + $0x1c8] sm:$0xff]
    %v144 = vld [vmem:[%s2 + $0x1d0] sm:$0xff]
    %v145 = vld [vmem:[%s2 + $0x1d8] sm:$0xff]
    %v146 = vld [vmem:[%s2 + $0x1e0] sm:$0xff]
    %v147 = vld [vmem:[%s2 + $0x1e8] sm:$0xff]
    %v148 = vld [vmem:[%s2 + $0x1f0] sm:$0xff]
    %v149 = vld [vmem:[%s2 + $0x1f8] sm:$0xff]
    %v150 = vld [vmem:[%s2 + $0x200] sm:$0xff]
    %v151 = vld [vmem:[%s2 + $0x208] sm:$0xff]
    %v152 = vld [vmem:[%s2 + $0x210] sm:$0xff]
    %v153 = vld [vmem:[%s2 + $0x218] sm:$0xff]
    %v154 = vld [vmem:[%s2 + $0x220] sm:$0xff]
    %v155 = vld [vmem:[%s2 + $0x228] sm:$0xff]
    %v156 = vld [vmem:[%s2 + $0x230] sm:$0xff]
    %v157 = vld [vmem:[%s2 + $0x238] sm:$0xff]
    %v158 = vld [vmem:[%s2 + $0x240] sm:$0xff]
    %v159 = vld [vmem:[%s2 + $0x248] sm:$0xff]
    %v160 = vld [vmem:[%s2 + $0x250] sm:$0xff]
    %v161 = vld [vmem:[%s2 + $0x258] sm:$0xff]
    %v162 = vld [vmem:[%s2 + $0x260] sm:$0xff]
    %v163 = vld [vmem:[%s2 + $0x268] sm:$0xff]
    %v164 = vld [vmem:[%s2 + $0x270] sm:$0xff]
    %v165 = vld [vmem:[%s2 + $0x278] sm:$0xff]
    %v166 = vld [vmem:[%s2 + $0x280] sm:$0xff]
    %v167 = vld [vmem:[%s2 + $0x288] sm:$0xff]
    %v168 = vld [vmem:[%s2 + $0x290] sm:$0xff]
    %v169 = vld [vmem:[%s2 + $0x298] sm:$0xff]
    %v170 = vld [vmem:[%s2 + $0x2a0] sm:$0xff]
    %v171 = vld [vmem:[%s2 + $0x2a8] sm:$0xff]
    %v172 = vld [vmem:[%s2 + $0x2b0] sm:$0xff]
    %v173 = vld [vmem:[%s2 + $0x2b8] sm:$0xff]
    %v174 = vld [vmem:[%s2 + $0x2c0] sm:$0xff]
    %v175 = vld [vmem:[%s2 + $0x2c8] sm:$0xff]
    %v176 = vld [vmem:[%s2 + $0x2d0] sm:$0xff]
    %v177 = vld [vmem:[%s2 + $0x2d8] sm:$0xff]
    %v178 = vld [vmem:[%s2 + $0x2e0] sm:$0xff]
    %v179 = vld [vmem:[%s2 + $0x2e8] sm:$0xff]
    %v180 = vld [vmem:[%s2 + $0x2f0] sm:$0xff]
    %v181 = vld [vmem:[%s2 + $0x2f8] sm:$0xff]
    %v182 = vld [vmem:[%s2 + $0x300] sm:$0xff]
    %v183 = vld [vmem:[%s2 + $0x308] sm:$0xff]
    %v184 = vld [vmem:[%s2 + $0x310] sm:$0xff]
    %v185 = vld [vmem:[%s2 + $0x318] sm:$0xff]
    %v186 = vld [vmem:[%s2 + $0x320] sm:$0xff]
    %v187 = vld [vmem:[%s2 + $0x328] sm:$0xff]
    %v188 = vld [vmem:[%s2 + $0x330] sm:$0xff]
    %v189 = vld [vmem:[%s2 + $0x338] sm:$0xff]
    %v190 = vld [vmem:[%s2 + $0x340] sm:$0xff]
    %v191 = vld [vmem:[%s2 + $0x348] sm:$0xff]
    %v192 = vld [vmem:[%s2 + $0x350] sm:$0xff]
    %v193 = vld [vmem:[%s2 + $0x358] sm:$0xff]
    %v194 = vld [vmem:[%s2 + $0x360] sm:$0xff]
    %v195 = vld [vmem:[%s2 + $0x368] sm:$0xff]
    %v196 = vld [vmem:[%s2 + $0x370] sm:$0xff]
    %v197 = vld [vmem:[%s2 + $0x378] sm:$0xff]
    %v198 = vld [vmem:[%s2 + $0x380] sm:$0xff]
    %v199 = vld [vmem:[%s2 + $0x388] sm:$0xff]
    %v200 = vld [vmem:[%s2 + $0x390] sm:$0xff]
    %v201 = vld [vmem:[%s2 + $0x398] sm:$0xff]
    %v202 = vld [vmem:[%s2 + $0x3a0] sm:$0xff]
    %v203 = vld [vmem:[%s2 + $0x3a8] sm:$0xff]
    %v204 = vld [vmem:[%s2 + $0x3b0] sm:$0xff]
    %v205 = vld [vmem:[%s2 + $0x3b8] sm:$0xff]
    %v206 = vld [vmem:[%s2 + $0x3c0] sm:$0xff]
    %v207 = vld [vmem:[%s2 + $0x3c8] sm:$0xff]
    %v208 = vld [vmem:[%s2 + $0x3d0] sm:$0xff]
    %v209 = vld [vmem:[%s2 + $0x3d8] sm:$0xff]
    %v210 = vld [vmem:[%s2 + $0x3e0] sm:$0xff]
    %v211 = vld [vmem:[%s2 + $0x3e8] sm:$0xff]
    %v212 = vld [vmem:[%s2 + $0x3f0] sm:$0xff]
    %v213 = vld [vmem:[%s2 + $0x3f8] sm:$0xff]
    %v214 = vld [vmem:[%s2 + $0x400] sm:$0xff]
    %v215 = vld [vmem:[%s2 + $0x408] sm:$0xff]
    %v216 = vld [vmem:[%s2 + $0x410] sm:$0xff]
    %v217 = vld [vmem:[%s2 + $0x418] sm:$0xff]
    %v218 = vld [vmem:[%s2 + $0x420] sm:$0xff]
    %v219 = vld [vmem:[%s2 + $0x428] sm:$0xff]
    %v220 = vld [vmem:[%s2 + $0x430] sm:$0xff]
    %v221 = vld [vmem:[%s2 + $0x438] sm:$0xff]
    %v222 = vld [vmem:[%s2 + $0x440] sm:$0xff]
    %v223 = vld [vmem:[%s2 + $0x448] sm:$0xff]
    %v224 = vld [vmem:[%s2 + $0x450] sm:$0xff]
    %v225 = vld [vmem:[%s2 + $0x458] sm:$0xff]
    %v226 = vld [vmem:[%s2 + $0x460] sm:$0xff]
    %v227 = vld [vmem:[%s2 + $0x468] sm:$0xff]
    %v228 = vld [vmem:[%s2 + $0x470] sm:$0xff]
    %v229 = vld [vmem:[%s2 + $0x478] sm:$0xff]
    %v230 = vld [vmem:[%s2 + $0x480] sm:$0xff]
    %v231 = vld [vmem:[%s2 + $0x488] sm:$0xff]
    %v232 = vld [vmem:[%s2 + $0x490] sm:$0xff]
    %v233 = vld [vmem:[%s2 + $0x498] sm:$0xff]
    %v234 = vld [vmem:[%s2 + $0x4a0] sm:$0xff]
    %v235 = vld [vmem:[%s2 + $0x4a8] sm:$0xff]
    %v236 = vld [vmem:[%s2 + $0x4b0] sm:$0xff]
    %v237 = vld [vmem:[%s2 + $0x4b8] sm:$0xff]
    %v238 = vld [vmem:[%s2 + $0x4c0] sm:$0xff]
    %v239 = vld [vmem:[%s2 + $0x4c8] sm:$0xff]
    %v240 = vld [vmem:[%s2 + $0x4d0] sm:$0xff]
    %v241 = vld [vmem:[%s2 + $0x4d8] sm:$0xff]
    %v242 = vld [vmem:[%s2 + $0x4e0] sm:$0xff]
    %v243 = vld [vmem:[%s2 + $0x4e8] sm:$0xff]
    %v244 = vld [vmem:[%s2 + $0x4f0] sm:$0xff]
    %v245 = vld [vmem:[%s2 + $0x4f8] sm:$0xff]
    %v246 = vld [vmem:[%s2 + $0x500] sm:$0xff]
    %v247 = vld [vmem:[%s2 + $0x508] sm:$0xff]
    %v248 = vld [vmem:[%s2 + $0x510] sm:$0xff]
    %v249 = vld [vmem:[%s2 + $0x518] sm:$0xff]
    %v250 = vld [vmem:[%s2 + $0x520] sm:$0xff]
    %v251 = vld [vmem:[%s2 + $0x528] sm:$0xff]
    %v252 = vld [vmem:[%s2 + $0x530] sm:$0xff]
    %v253 = vld [vmem:[%s2 + $0x538] sm:$0xff]
    %v254 = vld [vmem:[%s2 + $0x540] sm:$0xff]
    %v255 = vld [vmem:[%s2 + $0x548] sm:$0xff]
    %v256 = vld [vmem:[%s2 + $0x550] sm:$0xff]
    %v257 = vld [vmem:[%s2 + $0x558] sm:$0xff]
    %v258 = vld [vmem:[%s2 + $0x560] sm:$0xff]
    %v259 = vld [vmem:[%s2 + $0x568] sm:$0xff]
    %v260 = vld [vmem:[%s2 + $0x570] sm:$0xff]
    %v261 = vld [vmem:[%s2 + $0x578] sm:$0xff]
    %v262 = vld [vmem:[%s2 + $0x580] sm:$0xff]
    %v263 = vld [vmem:[%s2 + $0x588] sm:$0xff]
    %v264 = vld [vmem:[%s2 + $0x590] sm:$0xff]
    %v265 = vld [vmem:[%s2 + $0x598] sm:$0xff]
    %v266 = vld [vmem:[%s2 + $0x5a0] sm:$0xff]
    %v267 = vld [vmem:[%s2 + $0x5a8] sm:$0xff]
    %v268 = vld [vmem:[%s2 + $0x5b0] sm:$0xff]
    %v269 = vld [vmem:[%s2 + $0x5b8] sm:$0xff]
    %v270 = vld [vmem:[%s2 + $0x5c0] sm:$0xff]
    %v271 = vld [vmem:[%s2 + $0x5c8] sm:$0xff]
    %v272 = vld [vmem:[%s2 + $0x5d0] sm:$0xff]
    %v273 = vld [vmem:[%s2 + $0x5d8] sm:$0xff]
    %v274 = vld [vmem:[%s2 + $0x5e0] sm:$0xff]
    %v275 = vld [vmem:[%s2 + $0x5e8] sm:$0xff]
    %v276 = vld [vmem:[%s2 + $0x5f0] sm:$0xff]
    %v277 = vld [vmem:[%s2 + $0x5f8] sm:$0xff]
    %v278 = vld [vmem:[%s2 + $0x600] sm:$0xff]
    %v279 = vld [vmem:[%s2 + $0x608] sm:$0xff]
    %v280 = vld [vmem:[%s2 + $0x610] sm:$0xff]
    %v281 = vld [vmem:[%s2 + $0x618] sm:$0xff]
    %v282 = vld [vmem:[%s2 + $0x620] sm:$0xff]
    %v283 = vld [vmem:[%s2 + $0x628] sm:$0xff]
    %v284 = vld [vmem:[%s2 + $0x630] sm:$0xff]
    %v285 = vld [vmem:[%s2 + $0x638] sm:$0xff]
    %v286 = vld [vmem:[%s2 + $0x640] sm:$0xff]
    %v287 = vld [vmem:[%s2 + $0x648] sm:$0xff]
    %v288 = vld [vmem:[%s2 + $0x650] sm:$0xff]
    %v289 = vld [vmem:[%s2 + $0x658] sm:$0xff]
    %v290 = vld [vmem:[%s2 + $0x660] sm:$0xff]
    %v291 = vld [vmem:[%s2 + $0x668] sm:$0xff]
    %v292 = vld [vmem:[%s2 + $0x670] sm:$0xff]
    %v293 = vld [vmem:[%s2 + $0x678] sm:$0xff]
    %v294 = vld [vmem:[%s2 + $0x680] sm:$0xff]
    %v295 = vld [vmem:[%s2 + $0x688] sm:$0xff]
    %v296 = vld [vmem:[%s2 + $0x690] sm:$0xff]
    %v297 = vld [vmem:[%s2 + $0x698] sm:$0xff]
    %v298 = vld [vmem:[%s2 + $0x6a0] sm:$0xff]
    %v299 = vld [vmem:[%s2 + $0x6a8] sm:$0xff]
    %v300 = vld [vmem:[%s2 + $0x6b0] sm:$0xff]
    %v301 = vld [vmem:[%s2 + $0x6b8] sm:$0xff]
    %v302 = vld [vmem:[%s2 + $0x6c0] sm:$0xff]
    %v303 = vld [vmem:[%s2 + $0x6c8] sm:$0xff]
    %v304 = vld [vmem:[%s2 + $0x6d0] sm:$0xff]
    %v305 = vld [vmem:[%s2 + $0x6d8] sm:$0xff]
    %v306 = vld [vmem:[%s2 + $0x6e0] sm:$0xff]
    %v307 = vld [vmem:[%s2 + $0x6e8] sm:$0xff]
    %v308 = vld [vmem:[%s2 + $0x6f0] sm:$0xff]
    %v309 = vld [vmem:[%s2 + $0x6f8] sm:$0xff]
    %v310 = vld [vmem:[%s2 + $0x700] sm:$0xff]
    %v311 = vld [vmem:[%s2 + $0x708] sm:$0xff]
    %v312 = vld [vmem:[%s2 + $0x710] sm:$0xff]
    %v313 = vld [vmem:[%s2 + $0x718] sm:$0xff]
    %v314 = vld [vmem:[%s2 + $0x720] sm:$0xff]
    %v315 = vld [vmem:[%s2 + $0x728] sm:$0xff]
    %v316 = vld [vmem:[%s2 + $0x730] sm:$0xff]
    %v317 = vld [vmem:[%s2 + $0x738] sm:$0xff]
    %v318 = vld [vmem:[%s2 + $0x740] sm:$0xff]
    %v319 = vld [vmem:[%s2 + $0x748] sm:$0xff]
    %v320 = vld [vmem:[%s2 + $0x750] sm:$0xff]
    %v321 = vld [vmem:[%s2 + $0x758] sm:$0xff]
    %v322 = vld [vmem:[%s2 + $0x760] sm:$0xff]
    %v323 = vld [vmem:[%s2 + $0x768] sm:$0xff]
    %v324 = vld [vmem:[%s2 + $0x770] sm:$0xff]
    %v325 = vld [vmem:[%s2 + $0x778] sm:$0xff]
    %v326 = vld [vmem:[%s2 + $0x780] sm:$0xff]
    %v327 = vld [vmem:[%s2 + $0x788] sm:$0xff]
    %v328 = vld [vmem:[%s2 + $0x790] sm:$0xff]
    %v329 = vld [vmem:[%s2 + $0x798] sm:$0xff]
    %v330 = vld [vmem:[%s2 + $0x7a0] sm:$0xff]
    %v331 = vld [vmem:[%s2 + $0x7a8] sm:$0xff]
    %v332 = vld [vmem:[%s2 + $0x7b0] sm:$0xff]
    %v333 = vld [vmem:[%s2 + $0x7b8] sm:$0xff]
    %v334 = vld [vmem:[%s2 + $0x7c0] sm:$0xff]
    %v335 = vld [vmem:[%s2 + $0x7c8] sm:$0xff]
    %v336 = vld [vmem:[%s2 + $0x7d0] sm:$0xff]
    %v337 = vld [vmem:[%s2 + $0x7d8] sm:$0xff]
    %v338 = vld [vmem:[%s2 + $0x7e0] sm:$0xff]
    %v339 = vld [vmem:[%s2 + $0x7e8] sm:$0xff]
    %v340 = vld [vmem:[%s2 + $0x7f0] sm:$0xff]
    %v341 = vld [vmem:[%s2 + $0x7f8] sm:$0xff]
    %v342 = vld [vmem:[%s3] sm:$0x1]
    %v344 = vlaneseq
    %v345 = vshrl.u32 %v344, 7
    %v346 = vsub.s32 0, %v345
    %v347 = vrot.slane %v342, %v346
    %349 = vmatprep.subr.mxu0 0.0
    %350 = vmatpush1.msra.mxu0 %v86
    %351 = vmatprep.subr.mxu0 0.0
    %352 = vmatpush1.msra.mxu0 %v87
    %353 = vmatprep.subr.mxu0 0.0
    %354 = vmatpush1.msra.mxu0 %v88
    %355 = vmatprep.subr.mxu0 0.0
    %356 = vmatpush1.msra.mxu0 %v89
    %357 = vmatprep.subr.mxu0 0.0
    %358 = vmatpush1.msra.mxu0 %v90
    %359 = vmatprep.subr.mxu0 0.0
    %360 = vmatpush1.msra.mxu0 %v91
    %361 = vmatprep.subr.mxu0 0.0
    %362 = vmatpush1.msra.mxu0 %v92
    %363 = vmatprep.subr.mxu0 0.0
    %364 = vmatpush1.msra.mxu0 %v93
    %365 = vmatprep.subr.mxu0 0.0
    %366 = vmatpush1.msra.mxu0 %v94
    %367 = vmatprep.subr.mxu0 0.0
    %368 = vmatpush1.msra.mxu0 %v95
    %369 = vmatprep.subr.mxu0 0.0
    %370 = vmatpush1.msra.mxu0 %v96
    %371 = vmatprep.subr.mxu0 0.0
    %372 = vmatpush1.msra.mxu0 %v97
    %373 = vmatprep.subr.mxu0 0.0
    %374 = vmatpush1.msra.mxu0 %v98
    %375 = vmatprep.subr.mxu0 0.0
    %376 = vmatpush1.msra.mxu0 %v99
    %377 = vmatprep.subr.mxu0 0.0
    %378 = vmatpush1.msra.mxu0 %v100
    %379 = vmatprep.subr.mxu0 0.0
    %380 = vmatpush1.msra.mxu0 %v101
    %381 = vmatprep.subr.mxu0 0.0
    %382 = vmatpush1.msra.mxu0 %v102
    %383 = vmatprep.subr.mxu0 0.0
    %384 = vmatpush1.msra.mxu0 %v103
    %385 = vmatprep.subr.mxu0 0.0
    %386 = vmatpush1.msra.mxu0 %v104
    %387 = vmatprep.subr.mxu0 0.0
    %388 = vmatpush1.msra.mxu0 %v105
    %389 = vmatprep.subr.mxu0 0.0
    %390 = vmatpush1.msra.mxu0 %v106
    %391 = vmatprep.subr.mxu0 0.0
    %392 = vmatpush1.msra.mxu0 %v107
    %393 = vmatprep.subr.mxu0 0.0
    %394 = vmatpush1.msra.mxu0 %v108
    %395 = vmatprep.subr.mxu0 0.0
    %396 = vmatpush1.msra.mxu0 %v109
    %397 = vmatprep.subr.mxu0 0.0
    %398 = vmatpush1.msra.mxu0 %v110
    %399 = vmatprep.subr.mxu0 0.0
    %400 = vmatpush1.msra.mxu0 %v111
    %401 = vmatprep.subr.mxu0 0.0
    %402 = vmatpush1.msra.mxu0 %v112
    %403 = vmatprep.subr.mxu0 0.0
    %404 = vmatpush1.msra.mxu0 %v113
    %405 = vmatprep.subr.mxu0 0.0
    %406 = vmatpush1.msra.mxu0 %v114
    %407 = vmatprep.subr.mxu0 0.0
    %408 = vmatpush1.msra.mxu0 %v115
    %409 = vmatprep.subr.mxu0 0.0
    %410 = vmatpush1.msra.mxu0 %v116
    %411 = vmatprep.subr.mxu0 0.0
    %412 = vmatpush1.msra.mxu0 %v117
    %413 = vmatprep.mubr.f32.mxu0 %v55
    %414 = vmatmul.mubr.f32.gmra.mrb[0].mxu0 %v54
    %v415 = vpop.f32.mrb[0].mxu0
    %v416 = vadd.f32 %v347, %v415
    %v417 = vpop.f32.mrb[0].mxu0
    %418 = vmatprep.mubr.f32.mxu0 %v71
    %419 = vmatmul.mubr.f32.gmra.mrb[0].mxu0 %v70
    %v420 = vpop.f32.mrb[0].mxu0
    %v421 = vadd.f32 %v347, %v420
    %v422 = vpop.f32.mrb[0].mxu0
    %423 = vdwg.mxu0
    %424 = vmatprep.subr.mxu0 0.0
    %425 = vmatpush1.msra.mxu0 %v118
    %426 = vmatprep.subr.mxu0 0.0
    %427 = vmatpush1.msra.mxu0 %v119
    %428 = vmatprep.subr.mxu0 0.0
    %429 = vmatpush1.msra.mxu0 %v120
    %430 = vmatprep.subr.mxu0 0.0
    %431 = vmatpush1.msra.mxu0 %v121
    %432 = vmatprep.subr.mxu0 0.0
    %433 = vmatpush1.msra.mxu0 %v122
    %434 = vmatprep.subr.mxu0 0.0
    %435 = vmatpush1.msra.mxu0 %v123
    %436 = vmatprep.subr.mxu0 0.0
    %437 = vmatpush1.msra.mxu0 %v124
    %438 = vmatprep.subr.mxu0 0.0
    %439 = vmatpush1.msra.mxu0 %v125
    %440 = vmatprep.subr.mxu0 0.0
    %441 = vmatpush1.msra.mxu0 %v126
    %442 = vmatprep.subr.mxu0 0.0
    %443 = vmatpush1.msra.mxu0 %v127
    %444 = vmatprep.subr.mxu0 0.0
    %445 = vmatpush1.msra.mxu0 %v128
    %446 = vmatprep.subr.mxu0 0.0
    %447 = vmatpush1.msra.mxu0 %v129
    %448 = vmatprep.subr.mxu0 0.0
    %449 = vmatpush1.msra.mxu0 %v130
    %450 = vmatprep.subr.mxu0 0.0
    %451 = vmatpush1.msra.mxu0 %v131
    %452 = vmatprep.subr.mxu0 0.0
    %453 = vmatpush1.msra.mxu0 %v132
    %454 = vmatprep.subr.mxu0 0.0
    %455 = vmatpush1.msra.mxu0 %v133
    %456 = vmatprep.subr.mxu0 0.0
    %457 = vmatpush1.msra.mxu0 %v134
    %458 = vmatprep.subr.mxu0 0.0
    %459 = vmatpush1.msra.mxu0 %v135
    %460 = vmatprep.subr.mxu0 0.0
    %461 = vmatpush1.msra.mxu0 %v136
    %462 = vmatprep.subr.mxu0 0.0
    %463 = vmatpush1.msra.mxu0 %v137
    %464 = vmatprep.subr.mxu0 0.0
    %465 = vmatpush1.msra.mxu0 %v138
    %466 = vmatprep.subr.mxu0 0.0
    %467 = vmatpush1.msra.mxu0 %v139
    %468 = vmatprep.subr.mxu0 0.0
    %469 = vmatpush1.msra.mxu0 %v140
    %470 = vmatprep.subr.mxu0 0.0
    %471 = vmatpush1.msra.mxu0 %v141
    %472 = vmatprep.subr.mxu0 0.0
    %473 = vmatpush1.msra.mxu0 %v142
    %474 = vmatprep.subr.mxu0 0.0
    %475 = vmatpush1.msra.mxu0 %v143
    %476 = vmatprep.subr.mxu0 0.0
    %477 = vmatpush1.msra.mxu0 %v144
    %478 = vmatprep.subr.mxu0 0.0
    %479 = vmatpush1.msra.mxu0 %v145
    %480 = vmatprep.subr.mxu0 0.0
    %481 = vmatpush1.msra.mxu0 %v146
    %482 = vmatprep.subr.mxu0 0.0
    %483 = vmatpush1.msra.mxu0 %v147
    %484 = vmatprep.subr.mxu0 0.0
    %485 = vmatpush1.msra.mxu0 %v148
    %486 = vmatprep.subr.mxu0 0.0
    %487 = vmatpush1.msra.mxu0 %v149
    %488 = vmatprep.mubr.f32.mxu0 %v57
    %489 = vmatmul.mubr.f32.gmra.mrb[0].mxu0 %v56
    %v490 = vpop.f32.mrb[0].mxu0
    %v491 = vadd.f32 %v416, %v490
    %v492 = vpop.f32.mrb[0].mxu0
    %493 = vmatprep.mubr.f32.mxu0 %v73
    %494 = vmatmul.mubr.f32.gmra.mrb[0].mxu0 %v72
    %v495 = vpop.f32.mrb[0].mxu0
    %v496 = vadd.f32 %v421, %v495
    %v497 = vpop.f32.mrb[0].mxu0
    %498 = vdwg.mxu0
    %499 = vmatprep.subr.mxu0 0.0
    %500 = vmatpush1.msra.mxu0 %v150
    %501 = vmatprep.subr.mxu0 0.0
    %502 = vmatpush1.msra.mxu0 %v151
    %503 = vmatprep.subr.mxu0 0.0
    %504 = vmatpush1.msra.mxu0 %v152
    %505 = vmatprep.subr.mxu0 0.0
    %506 = vmatpush1.msra.mxu0 %v153
    %507 = vmatprep.subr.mxu0 0.0
    %508 = vmatpush1.msra.mxu0 %v154
    %509 = vmatprep.subr.mxu0 0.0
    %510 = vmatpush1.msra.mxu0 %v155
    %511 = vmatprep.subr.mxu0 0.0
    %512 = vmatpush1.msra.mxu0 %v156
    %513 = vmatprep.subr.mxu0 0.0
    %514 = vmatpush1.msra.mxu0 %v157
    %515 = vmatprep.subr.mxu0 0.0
    %516 = vmatpush1.msra.mxu0 %v158
    %517 = vmatprep.subr.mxu0 0.0
    %518 = vmatpush1.msra.mxu0 %v159
    %519 = vmatprep.subr.mxu0 0.0
    %520 = vmatpush1.msra.mxu0 %v160
    %521 = vmatprep.subr.mxu0 0.0
    %522 = vmatpush1.msra.mxu0 %v161
    %523 = vmatprep.subr.mxu0 0.0
    %524 = vmatpush1.msra.mxu0 %v162
    %525 = vmatprep.subr.mxu0 0.0
    %526 = vmatpush1.msra.mxu0 %v163
    %527 = vmatprep.subr.mxu0 0.0
    %528 = vmatpush1.msra.mxu0 %v164
    %529 = vmatprep.subr.mxu0 0.0
    %530 = vmatpush1.msra.mxu0 %v165
    %531 = vmatprep.subr.mxu0 0.0
    %532 = vmatpush1.msra.mxu0 %v166
    %533 = vmatprep.subr.mxu0 0.0
    %534 = vmatpush1.msra.mxu0 %v167
    %535 = vmatprep.subr.mxu0 0.0
    %536 = vmatpush1.msra.mxu0 %v168
    %537 = vmatprep.subr.mxu0 0.0
    %538 = vmatpush1.msra.mxu0 %v169
    %539 = vmatprep.subr.mxu0 0.0
    %540 = vmatpush1.msra.mxu0 %v170
    %541 = vmatprep.subr.mxu0 0.0
    %542 = vmatpush1.msra.mxu0 %v171
    %543 = vmatprep.subr.mxu0 0.0
    %544 = vmatpush1.msra.mxu0 %v172
    %545 = vmatprep.subr.mxu0 0.0
    %546 = vmatpush1.msra.mxu0 %v173
    %547 = vmatprep.subr.mxu0 0.0
    %548 = vmatpush1.msra.mxu0 %v174
    %549 = vmatprep.subr.mxu0 0.0
    %550 = vmatpush1.msra.mxu0 %v175
    %551 = vmatprep.subr.mxu0 0.0
    %552 = vmatpush1.msra.mxu0 %v176
    %553 = vmatprep.subr.mxu0 0.0
    %554 = vmatpush1.msra.mxu0 %v177
    %555 = vmatprep.subr.mxu0 0.0
    %556 = vmatpush1.msra.mxu0 %v178
    %557 = vmatprep.subr.mxu0 0.0
    %558 = vmatpush1.msra.mxu0 %v179
    %559 = vmatprep.subr.mxu0 0.0
    %560 = vmatpush1.msra.mxu0 %v180
    %561 = vmatprep.subr.mxu0 0.0
    %562 = vmatpush1.msra.mxu0 %v181
    %563 = vmatprep.mubr.f32.mxu0 %v59
    %564 = vmatmul.mubr.f32.gmra.mrb[0].mxu0 %v58
    %v565 = vpop.f32.mrb[0].mxu0
    %v566 = vadd.f32 %v491, %v565
    %v567 = vpop.f32.mrb[0].mxu0
    %568 = vmatprep.mubr.f32.mxu0 %v75
    %569 = vmatmul.mubr.f32.gmra.mrb[0].mxu0 %v74
    %v570 = vpop.f32.mrb[0].mxu0
    %v571 = vadd.f32 %v496, %v570
    %v572 = vpop.f32.mrb[0].mxu0
    %573 = vdwg.mxu0
    %574 = vmatprep.subr.mxu0 0.0
    %575 = vmatpush1.msra.mxu0 %v182
    %576 = vmatprep.subr.mxu0 0.0
    %577 = vmatpush1.msra.mxu0 %v183
    %578 = vmatprep.subr.mxu0 0.0
    %579 = vmatpush1.msra.mxu0 %v184
    %580 = vmatprep.subr.mxu0 0.0
    %581 = vmatpush1.msra.mxu0 %v185
    %582 = vmatprep.subr.mxu0 0.0
    %583 = vmatpush1.msra.mxu0 %v186
    %584 = vmatprep.subr.mxu0 0.0
    %585 = vmatpush1.msra.mxu0 %v187
    %586 = vmatprep.subr.mxu0 0.0
    %587 = vmatpush1.msra.mxu0 %v188
    %588 = vmatprep.subr.mxu0 0.0
    %589 = vmatpush1.msra.mxu0 %v189
    %590 = vmatprep.subr.mxu0 0.0
    %591 = vmatpush1.msra.mxu0 %v190
    %592 = vmatprep.subr.mxu0 0.0
    %593 = vmatpush1.msra.mxu0 %v191
    %594 = vmatprep.subr.mxu0 0.0
    %595 = vmatpush1.msra.mxu0 %v192
    %596 = vmatprep.subr.mxu0 0.0
    %597 = vmatpush1.msra.mxu0 %v193
    %598 = vmatprep.subr.mxu0 0.0
    %599 = vmatpush1.msra.mxu0 %v194
    %600 = vmatprep.subr.mxu0 0.0
    %601 = vmatpush1.msra.mxu0 %v195
    %602 = vmatprep.subr.mxu0 0.0
    %603 = vmatpush1.msra.mxu0 %v196
    %604 = vmatprep.subr.mxu0 0.0
    %605 = vmatpush1.msra.mxu0 %v197
    %606 = vmatprep.subr.mxu0 0.0
    %607 = vmatpush1.msra.mxu0 %v198
    %608 = vmatprep.subr.mxu0 0.0
    %609 = vmatpush1.msra.mxu0 %v199
    %610 = vmatprep.subr.mxu0 0.0
    %611 = vmatpush1.msra.mxu0 %v200
    %612 = vmatprep.subr.mxu0 0.0
    %613 = vmatpush1.msra.mxu0 %v201
    %614 = vmatprep.subr.mxu0 0.0
    %615 = vmatpush1.msra.mxu0 %v202
    %616 = vmatprep.subr.mxu0 0.0
    %617 = vmatpush1.msra.mxu0 %v203
    %618 = vmatprep.subr.mxu0 0.0
    %619 = vmatpush1.msra.mxu0 %v204
    %620 = vmatprep.subr.mxu0 0.0
    %621 = vmatpush1.msra.mxu0 %v205
    %622 = vmatprep.subr.mxu0 0.0
    %623 = vmatpush1.msra.mxu0 %v206
    %624 = vmatprep.subr.mxu0 0.0
    %625 = vmatpush1.msra.mxu0 %v207
    %626 = vmatprep.subr.mxu0 0.0
    %627 = vmatpush1.msra.mxu0 %v208
    %628 = vmatprep.subr.mxu0 0.0
    %629 = vmatpush1.msra.mxu0 %v209
    %630 = vmatprep.subr.mxu0 0.0
    %631 = vmatpush1.msra.mxu0 %v210
    %632 = vmatprep.subr.mxu0 0.0
    %633 = vmatpush1.msra.mxu0 %v211
    %634 = vmatprep.subr.mxu0 0.0
    %635 = vmatpush1.msra.mxu0 %v212
    %636 = vmatprep.subr.mxu0 0.0
    %637 = vmatpush1.msra.mxu0 %v213
    %638 = vmatprep.mubr.f32.mxu0 %v61
    %639 = vmatmul.mubr.f32.gmra.mrb[0].mxu0 %v60
    %v640 = vpop.f32.mrb[0].mxu0
    %v641 = vadd.f32 %v566, %v640
    %v642 = vpop.f32.mrb[0].mxu0
    %643 = vmatprep.mubr.f32.mxu0 %v77
    %644 = vmatmul.mubr.f32.gmra.mrb[0].mxu0 %v76
    %v645 = vpop.f32.mrb[0].mxu0
    %v646 = vadd.f32 %v571, %v645
    %v647 = vpop.f32.mrb[0].mxu0
    %648 = vdwg.mxu0
    %649 = vmatprep.subr.mxu0 0.0
    %650 = vmatpush1.msra.mxu0 %v214
    %651 = vmatprep.subr.mxu0 0.0
    %652 = vmatpush1.msra.mxu0 %v215
    %653 = vmatprep.subr.mxu0 0.0
    %654 = vmatpush1.msra.mxu0 %v216
    %655 = vmatprep.subr.mxu0 0.0
    %656 = vmatpush1.msra.mxu0 %v217
    %657 = vmatprep.subr.mxu0 0.0
    %658 = vmatpush1.msra.mxu0 %v218
    %659 = vmatprep.subr.mxu0 0.0
    %660 = vmatpush1.msra.mxu0 %v219
    %661 = vmatprep.subr.mxu0 0.0
    %662 = vmatpush1.msra.mxu0 %v220
    %663 = vmatprep.subr.mxu0 0.0
    %664 = vmatpush1.msra.mxu0 %v221
    %665 = vmatprep.subr.mxu0 0.0
    %666 = vmatpush1.msra.mxu0 %v222
    %667 = vmatprep.subr.mxu0 0.0
    %668 = vmatpush1.msra.mxu0 %v223
    %669 = vmatprep.subr.mxu0 0.0
    %670 = vmatpush1.msra.mxu0 %v224
    %671 = vmatprep.subr.mxu0 0.0
    %672 = vmatpush1.msra.mxu0 %v225
    %673 = vmatprep.subr.mxu0 0.0
    %674 = vmatpush1.msra.mxu0 %v226
    %675 = vmatprep.subr.mxu0 0.0
    %676 = vmatpush1.msra.mxu0 %v227
    %677 = vmatprep.subr.mxu0 0.0
    %678 = vmatpush1.msra.mxu0 %v228
    %679 = vmatprep.subr.mxu0 0.0
    %680 = vmatpush1.msra.mxu0 %v229
    %681 = vmatprep.subr.mxu0 0.0
    %682 = vmatpush1.msra.mxu0 %v230
    %683 = vmatprep.subr.mxu0 0.0
    %684 = vmatpush1.msra.mxu0 %v231
    %685 = vmatprep.subr.mxu0 0.0
    %686 = vmatpush1.msra.mxu0 %v232
    %687 = vmatprep.subr.mxu0 0.0
    %688 = vmatpush1.msra.mxu0 %v233
    %689 = vmatprep.subr.mxu0 0.0
    %690 = vmatpush1.msra.mxu0 %v234
    %691 = vmatprep.subr.mxu0 0.0
    %692 = vmatpush1.msra.mxu0 %v235
    %693 = vmatprep.subr.mxu0 0.0
    %694 = vmatpush1.msra.mxu0 %v236
    %695 = vmatprep.subr.mxu0 0.0
    %696 = vmatpush1.msra.mxu0 %v237
    %697 = vmatprep.subr.mxu0 0.0
    %698 = vmatpush1.msra.mxu0 %v238
    %699 = vmatprep.subr.mxu0 0.0
    %700 = vmatpush1.msra.mxu0 %v239
    %701 = vmatprep.subr.mxu0 0.0
    %702 = vmatpush1.msra.mxu0 %v240
    %703 = vmatprep.subr.mxu0 0.0
    %704 = vmatpush1.msra.mxu0 %v241
    %705 = vmatprep.subr.mxu0 0.0
    %706 = vmatpush1.msra.mxu0 %v242
    %707 = vmatprep.subr.mxu0 0.0
    %708 = vmatpush1.msra.mxu0 %v243
    %709 = vmatprep.subr.mxu0 0.0
    %710 = vmatpush1.msra.mxu0 %v244
    %711 = vmatprep.subr.mxu0 0.0
    %712 = vmatpush1.msra.mxu0 %v245
    %713 = vmatprep.mubr.f32.mxu0 %v63
    %714 = vmatmul.mubr.f32.gmra.mrb[0].mxu0 %v62
    %v715 = vpop.f32.mrb[0].mxu0
    %v716 = vadd.f32 %v641, %v715
    %v717 = vpop.f32.mrb[0].mxu0
    %718 = vmatprep.mubr.f32.mxu0 %v79
    %719 = vmatmul.mubr.f32.gmra.mrb[0].mxu0 %v78
    %v720 = vpop.f32.mrb[0].mxu0
    %v721 = vadd.f32 %v646, %v720
    %v722 = vpop.f32.mrb[0].mxu0
    %723 = vdwg.mxu0
    %724 = vmatprep.subr.mxu0 0.0
    %725 = vmatpush1.msra.mxu0 %v246
    %726 = vmatprep.subr.mxu0 0.0
    %727 = vmatpush1.msra.mxu0 %v247
    %728 = vmatprep.subr.mxu0 0.0
    %729 = vmatpush1.msra.mxu0 %v248
    %730 = vmatprep.subr.mxu0 0.0
    %731 = vmatpush1.msra.mxu0 %v249
    %732 = vmatprep.subr.mxu0 0.0
    %733 = vmatpush1.msra.mxu0 %v250
    %734 = vmatprep.subr.mxu0 0.0
    %735 = vmatpush1.msra.mxu0 %v251
    %736 = vmatprep.subr.mxu0 0.0
    %737 = vmatpush1.msra.mxu0 %v252
    %738 = vmatprep.subr.mxu0 0.0
    %739 = vmatpush1.msra.mxu0 %v253
    %740 = vmatprep.subr.mxu0 0.0
    %741 = vmatpush1.msra.mxu0 %v254
    %742 = vmatprep.subr.mxu0 0.0
    %743 = vmatpush1.msra.mxu0 %v255
    %744 = vmatprep.subr.mxu0 0.0
    %745 = vmatpush1.msra.mxu0 %v256
    %746 = vmatprep.subr.mxu0 0.0
    %747 = vmatpush1.msra.mxu0 %v257
    %748 = vmatprep.subr.mxu0 0.0
    %749 = vmatpush1.msra.mxu0 %v258
    %750 = vmatprep.subr.mxu0 0.0
    %751 = vmatpush1.msra.mxu0 %v259
    %752 = vmatprep.subr.mxu0 0.0
    %753 = vmatpush1.msra.mxu0 %v260
    %754 = vmatprep.subr.mxu0 0.0
    %755 = vmatpush1.msra.mxu0 %v261
    %756 = vmatprep.subr.mxu0 0.0
    %757 = vmatpush1.msra.mxu0 %v262
    %758 = vmatprep.subr.mxu0 0.0
    %759 = vmatpush1.msra.mxu0 %v263
    %760 = vmatprep.subr.mxu0 0.0
    %761 = vmatpush1.msra.mxu0 %v264
    %762 = vmatprep.subr.mxu0 0.0
    %763 = vmatpush1.msra.mxu0 %v265
    %764 = vmatprep.subr.mxu0 0.0
    %765 = vmatpush1.msra.mxu0 %v266
    %766 = vmatprep.subr.mxu0 0.0
    %767 = vmatpush1.msra.mxu0 %v267
    %768 = vmatprep.subr.mxu0 0.0
    %769 = vmatpush1.msra.mxu0 %v268
    %770 = vmatprep.subr.mxu0 0.0
    %771 = vmatpush1.msra.mxu0 %v269
    %772 = vmatprep.subr.mxu0 0.0
    %773 = vmatpush1.msra.mxu0 %v270
    %774 = vmatprep.subr.mxu0 0.0
    %775 = vmatpush1.msra.mxu0 %v271
    %776 = vmatprep.subr.mxu0 0.0
    %777 = vmatpush1.msra.mxu0 %v272
    %778 = vmatprep.subr.mxu0 0.0
    %779 = vmatpush1.msra.mxu0 %v273
    %780 = vmatprep.subr.mxu0 0.0
    %781 = vmatpush1.msra.mxu0 %v274
    %782 = vmatprep.subr.mxu0 0.0
    %783 = vmatpush1.msra.mxu0 %v275
    %784 = vmatprep.subr.mxu0 0.0
    %785 = vmatpush1.msra.mxu0 %v276
    %786 = vmatprep.subr.mxu0 0.0
    %787 = vmatpush1.msra.mxu0 %v277
    %788 = vmatprep.mubr.f32.mxu0 %v65
    %789 = vmatmul.mubr.f32.gmra.mrb[0].mxu0 %v64
    %v790 = vpop.f32.mrb[0].mxu0
    %v791 = vadd.f32 %v716, %v790
    %v792 = vpop.f32.mrb[0].mxu0
    %793 = vmatprep.mubr.f32.mxu0 %v81
    %794 = vmatmul.mubr.f32.gmra.mrb[0].mxu0 %v80
    %v795 = vpop.f32.mrb[0].mxu0
    %v796 = vadd.f32 %v721, %v795
    %v797 = vpop.f32.mrb[0].mxu0
    %798 = vdwg.mxu0
    %799 = vmatprep.subr.mxu0 0.0
    %800 = vmatpush1.msra.mxu0 %v278
    %801 = vmatprep.subr.mxu0 0.0
    %802 = vmatpush1.msra.mxu0 %v279
    %803 = vmatprep.subr.mxu0 0.0
    %804 = vmatpush1.msra.mxu0 %v280
    %805 = vmatprep.subr.mxu0 0.0
    %806 = vmatpush1.msra.mxu0 %v281
    %807 = vmatprep.subr.mxu0 0.0
    %808 = vmatpush1.msra.mxu0 %v282
    %809 = vmatprep.subr.mxu0 0.0
    %810 = vmatpush1.msra.mxu0 %v283
    %811 = vmatprep.subr.mxu0 0.0
    %812 = vmatpush1.msra.mxu0 %v284
    %813 = vmatprep.subr.mxu0 0.0
    %814 = vmatpush1.msra.mxu0 %v285
    %815 = vmatprep.subr.mxu0 0.0
    %816 = vmatpush1.msra.mxu0 %v286
    %817 = vmatprep.subr.mxu0 0.0
    %818 = vmatpush1.msra.mxu0 %v287
    %819 = vmatprep.subr.mxu0 0.0
    %820 = vmatpush1.msra.mxu0 %v288
    %821 = vmatprep.subr.mxu0 0.0
    %822 = vmatpush1.msra.mxu0 %v289
    %823 = vmatprep.subr.mxu0 0.0
    %824 = vmatpush1.msra.mxu0 %v290
    %825 = vmatprep.subr.mxu0 0.0
    %826 = vmatpush1.msra.mxu0 %v291
    %827 = vmatprep.subr.mxu0 0.0
    %828 = vmatpush1.msra.mxu0 %v292
    %829 = vmatprep.subr.mxu0 0.0
    %830 = vmatpush1.msra.mxu0 %v293
    %831 = vmatprep.subr.mxu0 0.0
    %832 = vmatpush1.msra.mxu0 %v294
    %833 = vmatprep.subr.mxu0 0.0
    %834 = vmatpush1.msra.mxu0 %v295
    %835 = vmatprep.subr.mxu0 0.0
    %836 = vmatpush1.msra.mxu0 %v296
    %837 = vmatprep.subr.mxu0 0.0
    %838 = vmatpush1.msra.mxu0 %v297
    %839 = vmatprep.subr.mxu0 0.0
    %840 = vmatpush1.msra.mxu0 %v298
    %841 = vmatprep.subr.mxu0 0.0
    %842 = vmatpush1.msra.mxu0 %v299
    %843 = vmatprep.subr.mxu0 0.0
    %844 = vmatpush1.msra.mxu0 %v300
    %845 = vmatprep.subr.mxu0 0.0
    %846 = vmatpush1.msra.mxu0 %v301
    %847 = vmatprep.subr.mxu0 0.0
    %848 = vmatpush1.msra.mxu0 %v302
    %849 = vmatprep.subr.mxu0 0.0
    %850 = vmatpush1.msra.mxu0 %v303
    %851 = vmatprep.subr.mxu0 0.0
    %852 = vmatpush1.msra.mxu0 %v304
    %853 = vmatprep.subr.mxu0 0.0
    %854 = vmatpush1.msra.mxu0 %v305
    %855 = vmatprep.subr.mxu0 0.0
    %856 = vmatpush1.msra.mxu0 %v306
    %857 = vmatprep.subr.mxu0 0.0
    %858 = vmatpush1.msra.mxu0 %v307
    %859 = vmatprep.subr.mxu0 0.0
    %860 = vmatpush1.msra.mxu0 %v308
    %861 = vmatprep.subr.mxu0 0.0
    %862 = vmatpush1.msra.mxu0 %v309
    %863 = vmatprep.mubr.f32.mxu0 %v67
    %864 = vmatmul.mubr.f32.gmra.mrb[0].mxu0 %v66
    %v865 = vpop.f32.mrb[0].mxu0
    %v866 = vadd.f32 %v791, %v865
    %v867 = vpop.f32.mrb[0].mxu0
    %868 = vmatprep.mubr.f32.mxu0 %v83
    %869 = vmatmul.mubr.f32.gmra.mrb[0].mxu0 %v82
    %v870 = vpop.f32.mrb[0].mxu0
    %v871 = vadd.f32 %v796, %v870
    %v872 = vpop.f32.mrb[0].mxu0
    %873 = vdwg.mxu0
    %874 = vmatprep.subr.mxu0 0.0
    %875 = vmatpush1.msra.mxu0 %v310
    %876 = vmatprep.subr.mxu0 0.0
    %877 = vmatpush1.msra.mxu0 %v311
    %878 = vmatprep.subr.mxu0 0.0
    %879 = vmatpush1.msra.mxu0 %v312
    %880 = vmatprep.subr.mxu0 0.0
    %881 = vmatpush1.msra.mxu0 %v313
    %882 = vmatprep.subr.mxu0 0.0
    %883 = vmatpush1.msra.mxu0 %v314
    %884 = vmatprep.subr.mxu0 0.0
    %885 = vmatpush1.msra.mxu0 %v315
    %886 = vmatprep.subr.mxu0 0.0
    %887 = vmatpush1.msra.mxu0 %v316
    %888 = vmatprep.subr.mxu0 0.0
    %889 = vmatpush1.msra.mxu0 %v317
    %890 = vmatprep.subr.mxu0 0.0
    %891 = vmatpush1.msra.mxu0 %v318
    %892 = vmatprep.subr.mxu0 0.0
    %893 = vmatpush1.msra.mxu0 %v319
    %894 = vmatprep.subr.mxu0 0.0
    %895 = vmatpush1.msra.mxu0 %v320
    %896 = vmatprep.subr.mxu0 0.0
    %897 = vmatpush1.msra.mxu0 %v321
    %898 = vmatprep.subr.mxu0 0.0
    %899 = vmatpush1.msra.mxu0 %v322
    %900 = vmatprep.subr.mxu0 0.0
    %901 = vmatpush1.msra.mxu0 %v323
    %902 = vmatprep.subr.mxu0 0.0
    %903 = vmatpush1.msra.mxu0 %v324
    %904 = vmatprep.subr.mxu0 0.0
    %905 = vmatpush1.msra.mxu0 %v325
    %906 = vmatprep.subr.mxu0 0.0
    %907 = vmatpush1.msra.mxu0 %v326
    %908 = vmatprep.subr.mxu0 0.0
    %909 = vmatpush1.msra.mxu0 %v327
    %910 = vmatprep.subr.mxu0 0.0
    %911 = vmatpush1.msra.mxu0 %v328
    %912 = vmatprep.subr.mxu0 0.0
    %913 = vmatpush1.msra.mxu0 %v329
    %914 = vmatprep.subr.mxu0 0.0
    %915 = vmatpush1.msra.mxu0 %v330
    %916 = vmatprep.subr.mxu0 0.0
    %917 = vmatpush1.msra.mxu0 %v331
    %918 = vmatprep.subr.mxu0 0.0
    %919 = vmatpush1.msra.mxu0 %v332
    %920 = vmatprep.subr.mxu0 0.0
    %921 = vmatpush1.msra.mxu0 %v333
    %922 = vmatprep.subr.mxu0 0.0
    %923 = vmatpush1.msra.mxu0 %v334
    %924 = vmatprep.subr.mxu0 0.0
    %925 = vmatpush1.msra.mxu0 %v335
    %926 = vmatprep.subr.mxu0 0.0
    %927 = vmatpush1.msra.mxu0 %v336
    %928 = vmatprep.subr.mxu0 0.0
    %929 = vmatpush1.msra.mxu0 %v337
    %930 = vmatprep.subr.mxu0 0.0
    %931 = vmatpush1.msra.mxu0 %v338
    %932 = vmatprep.subr.mxu0 0.0
    %933 = vmatpush1.msra.mxu0 %v339
    %934 = vmatprep.subr.mxu0 0.0
    %935 = vmatpush1.msra.mxu0 %v340
    %936 = vmatprep.subr.mxu0 0.0
    %937 = vmatpush1.msra.mxu0 %v341
    %938 = vmatprep.mubr.f32.mxu0 %v69
    %939 = vmatmul.mubr.f32.gmra.mrb[0].mxu0 %v68
    %v940 = vpop.f32.mrb[0].mxu0
    %v941 = vadd.f32 %v866, %v940
    %v942 = vpop.f32.mrb[0].mxu0
    %943 = vmatprep.mubr.f32.mxu0 %v85
    %944 = vmatmul.mubr.f32.gmra.mrb[0].mxu0 %v84
    %v945 = vpop.f32.mrb[0].mxu0
    %v946 = vadd.f32 %v871, %v945
    %v947 = vpop.f32.mrb[0].mxu0
    %948 = vdwg.mxu0
    %v949 = vld [vmem:[%s1] sm:$0xff]
    %v950 = vld [vmem:[%s1 + $0x8] sm:$0xff]
    %v951 = vld [vmem:[%s4] sm:$0xff]
    %v952 = vld [vmem:[%s4 + $0x8] sm:$0xff]
    %v953 = vld [vmem:[%s4 + $0x10] sm:$0xff]
    %v954 = vld [vmem:[%s4 + $0x18] sm:$0xff]
    %v955 = vld [vmem:[%s4 + $0x20] sm:$0xff]
    %v956 = vld [vmem:[%s4 + $0x28] sm:$0xff]
    %v957 = vld [vmem:[%s4 + $0x30] sm:$0xff]
    %v958 = vld [vmem:[%s4 + $0x38] sm:$0xff]
    %v959 = vld [vmem:[%s4 + $0x40] sm:$0xff]
    %v960 = vld [vmem:[%s4 + $0x48] sm:$0xff]
    %v961 = vld [vmem:[%s4 + $0x50] sm:$0xff]
    %v962 = vld [vmem:[%s4 + $0x58] sm:$0xff]
    %v963 = vld [vmem:[%s4 + $0x60] sm:$0xff]
    %v964 = vld [vmem:[%s4 + $0x68] sm:$0xff]
    %v965 = vld [vmem:[%s4 + $0x70] sm:$0xff]
    %v966 = vld [vmem:[%s4 + $0x78] sm:$0xff]
    %v967 = vld [vmem:[%s5] sm:$0x1]
    %v969 = vlaneseq
    %v970 = vshrl.u32 %v969, 7
    %v971 = vsub.s32 0, %v970
    %v972 = vrot.slane %v967, %v971
    %974 = vmatprep.subr.mxu0 0.0
    %975 = vmatpush1.msra.mxu0 %v951
    %976 = vmatprep.subr.mxu0 0.0
    %977 = vmatpush1.msra.mxu0 %v952
    %978 = vmatprep.subr.mxu0 0.0
    %979 = vmatpush1.msra.mxu0 %v953
    %980 = vmatprep.subr.mxu0 0.0
    %981 = vmatpush1.msra.mxu0 %v954
    %982 = vmatprep.subr.mxu0 0.0
    %983 = vmatpush1.msra.mxu0 %v955
    %984 = vmatprep.subr.mxu0 0.0
    %985 = vmatpush1.msra.mxu0 %v956
    %986 = vmatprep.subr.mxu0 0.0
    %987 = vmatpush1.msra.mxu0 %v957
    %988 = vmatprep.subr.mxu0 0.0
    %989 = vmatpush1.msra.mxu0 %v958
    %990 = vmatprep.subr.mxu0 0.0
    %991 = vmatpush1.msra.mxu0 %v959
    %992 = vmatprep.subr.mxu0 0.0
    %993 = vmatpush1.msra.mxu0 %v960
    %994 = vmatprep.subr.mxu0 0.0
    %995 = vmatpush1.msra.mxu0 %v961
    %996 = vmatprep.subr.mxu0 0.0
    %997 = vmatpush1.msra.mxu0 %v962
    %998 = vmatprep.subr.mxu0 0.0
    %999 = vmatpush1.msra.mxu0 %v963
    %1000 = vmatprep.subr.mxu0 0.0
    %1001 = vmatpush1.msra.mxu0 %v964
    %1002 = vmatprep.subr.mxu0 0.0
    %1003 = vmatpush1.msra.mxu0 %v965
    %1004 = vmatprep.subr.mxu0 0.0
    %1005 = vmatpush1.msra.mxu0 %v966
    %1006 = vmatprep.subr.mxu0 0.0
    %1007 = vmatpush1.msra.mxu0 0.0
    %1008 = vmatprep.subr.mxu0 0.0
    %1009 = vmatpush1.msra.mxu0 0.0
    %1010 = vmatprep.subr.mxu0 0.0
    %1011 = vmatpush1.msra.mxu0 0.0
    %1012 = vmatprep.subr.mxu0 0.0
    %1013 = vmatpush1.msra.mxu0 0.0
    %1014 = vmatprep.subr.mxu0 0.0
    %1015 = vmatpush1.msra.mxu0 0.0
    %1016 = vmatprep.subr.mxu0 0.0
    %1017 = vmatpush1.msra.mxu0 0.0
    %1018 = vmatprep.subr.mxu0 0.0
    %1019 = vmatpush1.msra.mxu0 0.0
    %1020 = vmatprep.subr.mxu0 0.0
    %1021 = vmatpush1.msra.mxu0 0.0
    %1022 = vmatprep.subr.mxu0 0.0
    %1023 = vmatpush1.msra.mxu0 0.0
    %1024 = vmatprep.subr.mxu0 0.0
    %1025 = vmatpush1.msra.mxu0 0.0
    %1026 = vmatprep.subr.mxu0 0.0
    %1027 = vmatpush1.msra.mxu0 0.0
    %1028 = vmatprep.subr.mxu0 0.0
    %1029 = vmatpush1.msra.mxu0 0.0
    %1030 = vmatprep.subr.mxu0 0.0
    %1031 = vmatpush1.msra.mxu0 0.0
    %1032 = vmatprep.subr.mxu0 0.0
    %1033 = vmatpush1.msra.mxu0 0.0
    %1034 = vmatprep.subr.mxu0 0.0
    %1035 = vmatpush1.msra.mxu0 0.0
    %1036 = vmatprep.subr.mxu0 0.0
    %1037 = vmatpush1.msra.mxu0 0.0
    %1038 = vmatprep.mubr.f32.mxu0 0.0
    %1039 = vmatmul.mubr.f32.gmra.mrb[0].mxu0 %v949
    %v1040 = vpop.f32.mrb[0].mxu0
    %v1041 = vadd.f32 %v972, %v1040
    %v1042 = vpop.f32.mrb[0].mxu0
    %1043 = vmatprep.mubr.f32.mxu0 0.0
    %1044 = vmatmul.mubr.f32.gmra.mrb[0].mxu0 %v950
    %v1045 = vpop.f32.mrb[0].mxu0
    %v1046 = vadd.f32 %v972, %v1045
    %v1047 = vpop.f32.mrb[0].mxu0
    %1048 = vdwg.mxu0
    %v1049 = vld [vmem:[%s6] sm:$0xff]
    %v1050 = vld [vmem:[%s6 + $0x8] sm:$0xff]
    %v1051 = vld [vmem:[%s6 + $0x10] sm:$0xff]
    %v1052 = vld [vmem:[%s6 + $0x18] sm:$0xff]
    %v1053 = vld [vmem:[%s7] sm:$0xff]
    %v1054 = vld [vmem:[%s7 + $0x8] sm:$0xff]
    %v1055 = vld [vmem:[%s7 + $0x10] sm:$0xff]
    %v1056 = vld [vmem:[%s7 + $0x18] sm:$0xff]
    %vm1057 = vcmask 261120
    %v1059 = vsel %vm1057, %v1041, 0
    %v1062 = vsel %vm1057, %v1046, 0
    %1064 = vmatprep.subr.mxu0 0.0
    %1065 = vmatpush1.msra.mxu0 %v1053
    %1066 = vmatprep.subr.mxu0 0.0
    %1067 = vmatpush1.msra.mxu0 %v1054
    %1068 = vmatprep.subr.mxu0 0.0
    %1069 = vmatpush1.msra.mxu0 %v1055
    %1070 = vmatprep.subr.mxu0 0.0
    %1071 = vmatpush1.msra.mxu0 %v1056
    %1072 = vmatprep.subr.mxu0 0.0
    %1073 = vmatpush1.msra.mxu0 0.0
    %1074 = vmatprep.subr.mxu0 0.0
    %1075 = vmatpush1.msra.mxu0 0.0
    %1076 = vmatprep.subr.mxu0 0.0
    %1077 = vmatpush1.msra.mxu0 0.0
    %1078 = vmatprep.subr.mxu0 0.0
    %1079 = vmatpush1.msra.mxu0 0.0
    %1080 = vmatprep.subr.mxu0 0.0
    %1081 = vmatpush1.msra.mxu0 0.0
    %1082 = vmatprep.subr.mxu0 0.0
    %1083 = vmatpush1.msra.mxu0 0.0
    %1084 = vmatprep.subr.mxu0 0.0
    %1085 = vmatpush1.msra.mxu0 0.0
    %1086 = vmatprep.subr.mxu0 0.0
    %1087 = vmatpush1.msra.mxu0 0.0
    %1088 = vmatprep.subr.mxu0 0.0
    %1089 = vmatpush1.msra.mxu0 0.0
    %1090 = vmatprep.subr.mxu0 0.0
    %1091 = vmatpush1.msra.mxu0 0.0
    %1092 = vmatprep.subr.mxu0 0.0
    %1093 = vmatpush1.msra.mxu0 0.0
    %1094 = vmatprep.subr.mxu0 0.0
    %1095 = vmatpush1.msra.mxu0 0.0
    %1096 = vmatprep.subr.mxu0 0.0
    %1097 = vmatpush1.msra.mxu0 0.0
    %1098 = vmatprep.subr.mxu0 0.0
    %1099 = vmatpush1.msra.mxu0 0.0
    %1100 = vmatprep.subr.mxu0 0.0
    %1101 = vmatpush1.msra.mxu0 0.0
    %1102 = vmatprep.subr.mxu0 0.0
    %1103 = vmatpush1.msra.mxu0 0.0
    %1104 = vmatprep.subr.mxu0 0.0
    %1105 = vmatpush1.msra.mxu0 0.0
    %1106 = vmatprep.subr.mxu0 0.0
    %1107 = vmatpush1.msra.mxu0 0.0
    %1108 = vmatprep.subr.mxu0 0.0
    %1109 = vmatpush1.msra.mxu0 0.0
    %1110 = vmatprep.subr.mxu0 0.0
    %1111 = vmatpush1.msra.mxu0 0.0
    %1112 = vmatprep.subr.mxu0 0.0
    %1113 = vmatpush1.msra.mxu0 0.0
    %1114 = vmatprep.subr.mxu0 0.0
    %1115 = vmatpush1.msra.mxu0 0.0
    %1116 = vmatprep.subr.mxu0 0.0
    %1117 = vmatpush1.msra.mxu0 0.0
    %1118 = vmatprep.subr.mxu0 0.0
    %1119 = vmatpush1.msra.mxu0 0.0
    %1120 = vmatprep.subr.mxu0 0.0
    %1121 = vmatpush1.msra.mxu0 0.0
    %1122 = vmatprep.subr.mxu0 0.0
    %1123 = vmatpush1.msra.mxu0 0.0
    %1124 = vmatprep.subr.mxu0 0.0
    %1125 = vmatpush1.msra.mxu0 0.0
    %1126 = vmatprep.subr.mxu0 0.0
    %1127 = vmatpush1.msra.mxu0 0.0
    %1128 = vmatprep.mubr.f32.mxu0 0.0
    %1129 = vmatmul.mubr.f32.gmra.mrb[0].mxu0 %v1059
    %v1130 = vpop.f32.mrb[0].mxu0
    %v1131 = vadd.f32 0.0, %v1130
    %v1132 = vpop.f32.mrb[0].mxu0
    %1133 = vmatprep.mubr.f32.mxu0 0.0
    %1134 = vmatmul.mubr.f32.gmra.mrb[0].mxu0 %v1062
    %v1135 = vpop.f32.mrb[0].mxu0
    %v1136 = vadd.f32 0.0, %v1135
    %v1137 = vpop.f32.mrb[0].mxu0
    %1138 = vdwg.mxu0
    %v1140 = vsel %vm1057, %v941, 0
    %v1143 = vsel %vm1057, %v946, 0
    %1145 = vmatprep.subr.mxu0 0.0
    %1146 = vmatpush1.msra.mxu0 %v1049
    %1147 = vmatprep.subr.mxu0 0.0
    %1148 = vmatpush1.msra.mxu0 %v1050
    %1149 = vmatprep.subr.mxu0 0.0
    %1150 = vmatpush1.msra.mxu0 %v1051
    %1151 = vmatprep.subr.mxu0 0.0
    %1152 = vmatpush1.msra.mxu0 %v1052
    %1153 = vmatprep.subr.mxu0 0.0
    %1154 = vmatpush1.msra.mxu0 0.0
    %1155 = vmatprep.subr.mxu0 0.0
    %1156 = vmatpush1.msra.mxu0 0.0
    %1157 = vmatprep.subr.mxu0 0.0
    %1158 = vmatpush1.msra.mxu0 0.0
    %1159 = vmatprep.subr.mxu0 0.0
    %1160 = vmatpush1.msra.mxu0 0.0
    %1161 = vmatprep.subr.mxu0 0.0
    %1162 = vmatpush1.msra.mxu0 0.0
    %1163 = vmatprep.subr.mxu0 0.0
    %1164 = vmatpush1.msra.mxu0 0.0
    %1165 = vmatprep.subr.mxu0 0.0
    %1166 = vmatpush1.msra.mxu0 0.0
    %1167 = vmatprep.subr.mxu0 0.0
    %1168 = vmatpush1.msra.mxu0 0.0
    %1169 = vmatprep.subr.mxu0 0.0
    %1170 = vmatpush1.msra.mxu0 0.0
    %1171 = vmatprep.subr.mxu0 0.0
    %1172 = vmatpush1.msra.mxu0 0.0
    %1173 = vmatprep.subr.mxu0 0.0
    %1174 = vmatpush1.msra.mxu0 0.0
    %1175 = vmatprep.subr.mxu0 0.0
    %1176 = vmatpush1.msra.mxu0 0.0
    %1177 = vmatprep.subr.mxu0 0.0
    %1178 = vmatpush1.msra.mxu0 0.0
    %1179 = vmatprep.subr.mxu0 0.0
    %1180 = vmatpush1.msra.mxu0 0.0
    %1181 = vmatprep.subr.mxu0 0.0
    %1182 = vmatpush1.msra.mxu0 0.0
    %1183 = vmatprep.subr.mxu0 0.0
    %1184 = vmatpush1.msra.mxu0 0.0
    %1185 = vmatprep.subr.mxu0 0.0
    %1186 = vmatpush1.msra.mxu0 0.0
    %1187 = vmatprep.subr.mxu0 0.0
    %1188 = vmatpush1.msra.mxu0 0.0
    %1189 = vmatprep.subr.mxu0 0.0
    %1190 = vmatpush1.msra.mxu0 0.0
    %1191 = vmatprep.subr.mxu0 0.0
    %1192 = vmatpush1.msra.mxu0 0.0
    %1193 = vmatprep.subr.mxu0 0.0
    %1194 = vmatpush1.msra.mxu0 0.0
    %1195 = vmatprep.subr.mxu0 0.0
    %1196 = vmatpush1.msra.mxu0 0.0
    %1197 = vmatprep.subr.mxu0 0.0
    %1198 = vmatpush1.msra.mxu0 0.0
    %1199 = vmatprep.subr.mxu0 0.0
    %1200 = vmatpush1.msra.mxu0 0.0
    %1201 = vmatprep.subr.mxu0 0.0
    %1202 = vmatpush1.msra.mxu0 0.0
    %1203 = vmatprep.subr.mxu0 0.0
    %1204 = vmatpush1.msra.mxu0 0.0
    %1205 = vmatprep.subr.mxu0 0.0
    %1206 = vmatpush1.msra.mxu0 0.0
    %1207 = vmatprep.subr.mxu0 0.0
    %1208 = vmatpush1.msra.mxu0 0.0
    %1209 = vmatprep.mubr.f32.mxu0 0.0
    %1210 = vmatmul.mubr.f32.gmra.mrb[0].mxu0 %v1140
    %v1211 = vpop.f32.mrb[0].mxu0
    %v1212 = vadd.f32 %v1131, %v1211
    %v1213 = vpop.f32.mrb[0].mxu0
    %1214 = vmatprep.mubr.f32.mxu0 0.0
    %1215 = vmatmul.mubr.f32.gmra.mrb[0].mxu0 %v1143
    %v1216 = vpop.f32.mrb[0].mxu0
    %v1217 = vadd.f32 %v1136, %v1216
    %v1218 = vpop.f32.mrb[0].mxu0
    %1219 = vdwg.mxu0
    %v1220 = vld [vmem:[%s9] sm:$0x1]
    %v1222 = vlaneseq
    %v1223 = vshrl.u32 %v1222, 7
    %v1224 = vsub.s32 0, %v1223
    %v1225 = vrot.slane %v1220, %v1224
    %v1227 = vadd.f32 %v1212, %v1225
    %v1228 = vadd.f32 %v1217, %v1225
    %v1229 = vld [vmem:[%s8] sm:$0xff]
    %v1230 = vld [vmem:[%s8 + $0x8] sm:$0xff]
    %v1231 = vld [vmem:[%s8 + $0x10] sm:$0xff]
    %v1232 = vld [vmem:[%s8 + $0x18] sm:$0xff]
    %v1234 = vsel %vm1057, 0.0, 0
    %1236 = vmatprep.subr.mxu0 0.0
    %1237 = vmatpush1.msra.mxu0 %v1229
    %1238 = vmatprep.subr.mxu0 0.0
    %1239 = vmatpush1.msra.mxu0 %v1230
    %1240 = vmatprep.subr.mxu0 0.0
    %1241 = vmatpush1.msra.mxu0 %v1231
    %1242 = vmatprep.subr.mxu0 0.0
    %1243 = vmatpush1.msra.mxu0 %v1232
    %1244 = vmatprep.subr.mxu0 0.0
    %1245 = vmatpush1.msra.mxu0 0.0
    %1246 = vmatprep.subr.mxu0 0.0
    %1247 = vmatpush1.msra.mxu0 0.0
    %1248 = vmatprep.subr.mxu0 0.0
    %1249 = vmatpush1.msra.mxu0 0.0
    %1250 = vmatprep.subr.mxu0 0.0
    %1251 = vmatpush1.msra.mxu0 0.0
    %1252 = vmatprep.subr.mxu0 0.0
    %1253 = vmatpush1.msra.mxu0 0.0
    %1254 = vmatprep.subr.mxu0 0.0
    %1255 = vmatpush1.msra.mxu0 0.0
    %1256 = vmatprep.subr.mxu0 0.0
    %1257 = vmatpush1.msra.mxu0 0.0
    %1258 = vmatprep.subr.mxu0 0.0
    %1259 = vmatpush1.msra.mxu0 0.0
    %1260 = vmatprep.subr.mxu0 0.0
    %1261 = vmatpush1.msra.mxu0 0.0
    %1262 = vmatprep.subr.mxu0 0.0
    %1263 = vmatpush1.msra.mxu0 0.0
    %1264 = vmatprep.subr.mxu0 0.0
    %1265 = vmatpush1.msra.mxu0 0.0
    %1266 = vmatprep.subr.mxu0 0.0
    %1267 = vmatpush1.msra.mxu0 0.0
    %1268 = vmatprep.subr.mxu0 0.0
    %1269 = vmatpush1.msra.mxu0 0.0
    %1270 = vmatprep.subr.mxu0 0.0
    %1271 = vmatpush1.msra.mxu0 0.0
    %1272 = vmatprep.subr.mxu0 0.0
    %1273 = vmatpush1.msra.mxu0 0.0
    %1274 = vmatprep.subr.mxu0 0.0
    %1275 = vmatpush1.msra.mxu0 0.0
    %1276 = vmatprep.subr.mxu0 0.0
    %1277 = vmatpush1.msra.mxu0 0.0
    %1278 = vmatprep.subr.mxu0 0.0
    %1279 = vmatpush1.msra.mxu0 0.0
    %1280 = vmatprep.subr.mxu0 0.0
    %1281 = vmatpush1.msra.mxu0 0.0
    %1282 = vmatprep.subr.mxu0 0.0
    %1283 = vmatpush1.msra.mxu0 0.0
    %1284 = vmatprep.subr.mxu0 0.0
    %1285 = vmatpush1.msra.mxu0 0.0
    %1286 = vmatprep.subr.mxu0 0.0
    %1287 = vmatpush1.msra.mxu0 0.0
    %1288 = vmatprep.subr.mxu0 0.0
    %1289 = vmatpush1.msra.mxu0 0.0
    %1290 = vmatprep.subr.mxu0 0.0
    %1291 = vmatpush1.msra.mxu0 0.0
    %1292 = vmatprep.subr.mxu0 0.0
    %1293 = vmatpush1.msra.mxu0 0.0
    %1294 = vmatprep.subr.mxu0 0.0
    %1295 = vmatpush1.msra.mxu0 0.0
    %1296 = vmatprep.subr.mxu0 0.0
    %1297 = vmatpush1.msra.mxu0 0.0
    %1298 = vmatprep.subr.mxu0 0.0
    %1299 = vmatpush1.msra.mxu0 0.0
    %1300 = vmatprep.mubr.f32.mxu0 0.0
    %1301 = vmatmul.mubr.f32.gmra.mrb[0].mxu0 %v1234
    %v1302 = vpop.f32.mrb[0].mxu0
    %v1303 = vadd.f32 0.0, %v1302
    %v1304 = vpop.f32.mrb[0].mxu0
    %1305 = vdwg.mxu0
    %v1306 = vadd.f32 %v1227, %v1303
    %v1307 = vxor.u32 %v1306, 2147483648
    %v1308 = vmul.f32 %v1307, 1.442695
    %v1309 = vpow.pop %v1308
    %v1310 = vadd.f32 %v1309, 1.0
    %v1311 = vrcp.pop %v1310
    %v1312 = vmul.f32 1.0, %v1311
    %v1313 = vtanh.pop %v1306
    %v1314 = vmul.f32 %v1312, 0.0
    %1316 = vrot.lane.b32.xlu0 %v1313, 64
    %v1317 = vpop.permute.xlu0 %1316
    %v1319 = vmul.f32 %v1312, %v1317
    %1321 = vrot.lane.b32.xlu0 %v1319, 32
    %v1322 = vpop.permute.xlu0 %1321
    %v1324 = vadd.f32 %v1314, %v1322
    %v1325 = vtanh.pop %v1324
    %1327 = vrot.lane.b32.xlu0 %v1325, 64
    %v1328 = vpop.permute.xlu0 %1327
    %v1330 = vmul.f32 %v1312, %v1328
    %1332 = vrot.lane.b32.xlu0 %v1330, 32
    %v1333 = vpop.permute.xlu0 %1332
    %v1334 = vsel %vm1057, %v1333, 0
    %1336 = vmatprep.subr.mxu0 0.0
    %1337 = vmatpush1.msra.mxu0 %v1229
    %1338 = vmatprep.subr.mxu0 0.0
    %1339 = vmatpush1.msra.mxu0 %v1230
    %1340 = vmatprep.subr.mxu0 0.0
    %1341 = vmatpush1.msra.mxu0 %v1231
    %1342 = vmatprep.subr.mxu0 0.0
    %1343 = vmatpush1.msra.mxu0 %v1232
    %1344 = vmatprep.subr.mxu0 0.0
    %1345 = vmatpush1.msra.mxu0 0.0
    %1346 = vmatprep.subr.mxu0 0.0
    %1347 = vmatpush1.msra.mxu0 0.0
    %1348 = vmatprep.subr.mxu0 0.0
    %1349 = vmatpush1.msra.mxu0 0.0
    %1350 = vmatprep.subr.mxu0 0.0
    %1351 = vmatpush1.msra.mxu0 0.0
    %1352 = vmatprep.subr.mxu0 0.0
    %1353 = vmatpush1.msra.mxu0 0.0
    %1354 = vmatprep.subr.mxu0 0.0
    %1355 = vmatpush1.msra.mxu0 0.0
    %1356 = vmatprep.subr.mxu0 0.0
    %1357 = vmatpush1.msra.mxu0 0.0
    %1358 = vmatprep.subr.mxu0 0.0
    %1359 = vmatpush1.msra.mxu0 0.0
    %1360 = vmatprep.subr.mxu0 0.0
    %1361 = vmatpush1.msra.mxu0 0.0
    %1362 = vmatprep.subr.mxu0 0.0
    %1363 = vmatpush1.msra.mxu0 0.0
    %1364 = vmatprep.subr.mxu0 0.0
    %1365 = vmatpush1.msra.mxu0 0.0
    %1366 = vmatprep.subr.mxu0 0.0
    %1367 = vmatpush1.msra.mxu0 0.0
    %1368 = vmatprep.subr.mxu0 0.0
    %1369 = vmatpush1.msra.mxu0 0.0
    %1370 = vmatprep.subr.mxu0 0.0
    %1371 = vmatpush1.msra.mxu0 0.0
    %1372 = vmatprep.subr.mxu0 0.0
    %1373 = vmatpush1.msra.mxu0 0.0
    %1374 = vmatprep.subr.mxu0 0.0
    %1375 = vmatpush1.msra.mxu0 0.0
    %1376 = vmatprep.subr.mxu0 0.0
    %1377 = vmatpush1.msra.mxu0 0.0
    %1378 = vmatprep.subr.mxu0 0.0
    %1379 = vmatpush1.msra.mxu0 0.0
    %1380 = vmatprep.subr.mxu0 0.0
    %1381 = vmatpush1.msra.mxu0 0.0
    %1382 = vmatprep.subr.mxu0 0.0
    %1383 = vmatpush1.msra.mxu0 0.0
    %1384 = vmatprep.subr.mxu0 0.0
    %1385 = vmatpush1.msra.mxu0 0.0
    %1386 = vmatprep.subr.mxu0 0.0
    %1387 = vmatpush1.msra.mxu0 0.0
    %1388 = vmatprep.subr.mxu0 0.0
    %1389 = vmatpush1.msra.mxu0 0.0
    %1390 = vmatprep.subr.mxu0 0.0
    %1391 = vmatpush1.msra.mxu0 0.0
    %1392 = vmatprep.subr.mxu0 0.0
    %1393 = vmatpush1.msra.mxu0 0.0
    %1394 = vmatprep.subr.mxu0 0.0
    %1395 = vmatpush1.msra.mxu0 0.0
    %1396 = vmatprep.subr.mxu0 0.0
    %1397 = vmatpush1.msra.mxu0 0.0
    %1398 = vmatprep.subr.mxu0 0.0
    %1399 = vmatpush1.msra.mxu0 0.0
    %1400 = vmatprep.mubr.f32.mxu0 0.0
    %1401 = vmatmul.mubr.f32.gmra.mrb[0].mxu0 %v1334
    %v1402 = vpop.f32.mrb[0].mxu0
    %v1403 = vadd.f32 0.0, %v1402
    %v1404 = vpop.f32.mrb[0].mxu0
    %1405 = vdwg.mxu0
    %v1407 = vrot.slane %v1403, 6
    %v1409 = vadd.f32 %v1227, %v1407
    %v1410 = vxor.u32 %v1409, 2147483648
    %v1411 = vmul.f32 %v1410, 1.442695
    %v1412 = vpow.pop %v1411
    %v1413 = vadd.f32 %v1412, 1.0
    %v1414 = vrcp.pop %v1413
    %v1415 = vmul.f32 1.0, %v1414
    %v1416 = vtanh.pop %v1409
    %v1418 = vrot.slane %v1324, 6
    %v1420 = vmul.f32 %v1415, %v1418
    %1422 = vrot.lane.b32.xlu0 %v1416, 64
    %v1423 = vpop.permute.xlu0 %1422
    %v1425 = vmul.f32 %v1415, %v1423
    %1427 = vrot.lane.b32.xlu0 %v1425, 32
    %v1428 = vpop.permute.xlu0 %1427
    %v1430 = vadd.f32 %v1420, %v1428
    %v1431 = vtanh.pop %v1430
    %1433 = vrot.lane.b32.xlu0 %v1431, 64
    %v1434 = vpop.permute.xlu0 %1433
    %v1436 = vmul.f32 %v1415, %v1434
    %v1438 = vrot.slane %v1436, 2
    %1439 = vrot.lane.b32.xlu0 %v1438, 32
    %v1440 = vpop.permute.xlu0 %1439
    %v1441 = vsel %vm1057, %v1440, 0
    %1443 = vmatprep.subr.mxu0 0.0
    %1444 = vmatpush1.msra.mxu0 %v1229
    %1445 = vmatprep.subr.mxu0 0.0
    %1446 = vmatpush1.msra.mxu0 %v1230
    %1447 = vmatprep.subr.mxu0 0.0
    %1448 = vmatpush1.msra.mxu0 %v1231
    %1449 = vmatprep.subr.mxu0 0.0
    %1450 = vmatpush1.msra.mxu0 %v1232
    %1451 = vmatprep.subr.mxu0 0.0
    %1452 = vmatpush1.msra.mxu0 0.0
    %1453 = vmatprep.subr.mxu0 0.0
    %1454 = vmatpush1.msra.mxu0 0.0
    %1455 = vmatprep.subr.mxu0 0.0
    %1456 = vmatpush1.msra.mxu0 0.0
    %1457 = vmatprep.subr.mxu0 0.0
    %1458 = vmatpush1.msra.mxu0 0.0
    %1459 = vmatprep.subr.mxu0 0.0
    %1460 = vmatpush1.msra.mxu0 0.0
    %1461 = vmatprep.subr.mxu0 0.0
    %1462 = vmatpush1.msra.mxu0 0.0
    %1463 = vmatprep.subr.mxu0 0.0
    %1464 = vmatpush1.msra.mxu0 0.0
    %1465 = vmatprep.subr.mxu0 0.0
    %1466 = vmatpush1.msra.mxu0 0.0
    %1467 = vmatprep.subr.mxu0 0.0
    %1468 = vmatpush1.msra.mxu0 0.0
    %1469 = vmatprep.subr.mxu0 0.0
    %1470 = vmatpush1.msra.mxu0 0.0
    %1471 = vmatprep.subr.mxu0 0.0
    %1472 = vmatpush1.msra.mxu0 0.0
    %1473 = vmatprep.subr.mxu0 0.0
    %1474 = vmatpush1.msra.mxu0 0.0
    %1475 = vmatprep.subr.mxu0 0.0
    %1476 = vmatpush1.msra.mxu0 0.0
    %1477 = vmatprep.subr.mxu0 0.0
    %1478 = vmatpush1.msra.mxu0 0.0
    %1479 = vmatprep.subr.mxu0 0.0
    %1480 = vmatpush1.msra.mxu0 0.0
    %1481 = vmatprep.subr.mxu0 0.0
    %1482 = vmatpush1.msra.mxu0 0.0
    %1483 = vmatprep.subr.mxu0 0.0
    %1484 = vmatpush1.msra.mxu0 0.0
    %1485 = vmatprep.subr.mxu0 0.0
    %1486 = vmatpush1.msra.mxu0 0.0
    %1487 = vmatprep.subr.mxu0 0.0
    %1488 = vmatpush1.msra.mxu0 0.0
    %1489 = vmatprep.subr.mxu0 0.0
    %1490 = vmatpush1.msra.mxu0 0.0
    %1491 = vmatprep.subr.mxu0 0.0
    %1492 = vmatpush1.msra.mxu0 0.0
    %1493 = vmatprep.subr.mxu0 0.0
    %1494 = vmatpush1.msra.mxu0 0.0
    %1495 = vmatprep.subr.mxu0 0.0
    %1496 = vmatpush1.msra.mxu0 0.0
    %1497 = vmatprep.subr.mxu0 0.0
    %1498 = vmatpush1.msra.mxu0 0.0
    %1499 = vmatprep.subr.mxu0 0.0
    %1500 = vmatpush1.msra.mxu0 0.0
    %1501 = vmatprep.subr.mxu0 0.0
    %1502 = vmatpush1.msra.mxu0 0.0
    %1503 = vmatprep.subr.mxu0 0.0
    %1504 = vmatpush1.msra.mxu0 0.0
    %1505 = vmatprep.subr.mxu0 0.0
    %1506 = vmatpush1.msra.mxu0 0.0
    %1507 = vmatprep.mubr.f32.mxu0 0.0
    %1508 = vmatmul.mubr.f32.gmra.mrb[0].mxu0 %v1441
    %v1509 = vpop.f32.mrb[0].mxu0
    %v1510 = vadd.f32 0.0, %v1509
    %v1511 = vpop.f32.mrb[0].mxu0
    %1512 = vdwg.mxu0
    %v1514 = vrot.slane %v1510, 4
    %v1516 = vadd.f32 %v1227, %v1514
    %v1517 = vxor.u32 %v1516, 2147483648
    %v1518 = vmul.f32 %v1517, 1.442695
    %v1519 = vpow.pop %v1518
    %v1520 = vadd.f32 %v1519, 1.0
    %v1521 = vrcp.pop %v1520
    %v1522 = vmul.f32 1.0, %v1521
    %v1523 = vtanh.pop %v1516
    %v1525 = vrot.slane %v1430, 6
    %v1527 = vmul.f32 %v1522, %v1525
    %1529 = vrot.lane.b32.xlu0 %v1523, 64
    %v1530 = vpop.permute.xlu0 %1529
    %v1532 = vmul.f32 %v1522, %v1530
    %1534 = vrot.lane.b32.xlu0 %v1532, 32
    %v1535 = vpop.permute.xlu0 %1534
    %v1537 = vadd.f32 %v1527, %v1535
    %v1538 = vtanh.pop %v1537
    %1540 = vrot.lane.b32.xlu0 %v1538, 64
    %v1541 = vpop.permute.xlu0 %1540
    %v1543 = vmul.f32 %v1522, %v1541
    %v1545 = vrot.slane %v1543, 4
    %1546 = vrot.lane.b32.xlu0 %v1545, 32
    %v1547 = vpop.permute.xlu0 %1546
    %v1548 = vsel %vm1057, %v1547, 0
    %1550 = vmatprep.subr.mxu0 0.0
    %1551 = vmatpush1.msra.mxu0 %v1229
    %1552 = vmatprep.subr.mxu0 0.0
    %1553 = vmatpush1.msra.mxu0 %v1230
    %1554 = vmatprep.subr.mxu0 0.0
    %1555 = vmatpush1.msra.mxu0 %v1231
    %1556 = vmatprep.subr.mxu0 0.0
    %1557 = vmatpush1.msra.mxu0 %v1232
    %1558 = vmatprep.subr.mxu0 0.0
    %1559 = vmatpush1.msra.mxu0 0.0
    %1560 = vmatprep.subr.mxu0 0.0
    %1561 = vmatpush1.msra.mxu0 0.0
    %1562 = vmatprep.subr.mxu0 0.0
    %1563 = vmatpush1.msra.mxu0 0.0
    %1564 = vmatprep.subr.mxu0 0.0
    %1565 = vmatpush1.msra.mxu0 0.0
    %1566 = vmatprep.subr.mxu0 0.0
    %1567 = vmatpush1.msra.mxu0 0.0
    %1568 = vmatprep.subr.mxu0 0.0
    %1569 = vmatpush1.msra.mxu0 0.0
    %1570 = vmatprep.subr.mxu0 0.0
    %1571 = vmatpush1.msra.mxu0 0.0
    %1572 = vmatprep.subr.mxu0 0.0
    %1573 = vmatpush1.msra.mxu0 0.0
    %1574 = vmatprep.subr.mxu0 0.0
    %1575 = vmatpush1.msra.mxu0 0.0
    %1576 = vmatprep.subr.mxu0 0.0
    %1577 = vmatpush1.msra.mxu0 0.0
    %1578 = vmatprep.subr.mxu0 0.0
    %1579 = vmatpush1.msra.mxu0 0.0
    %1580 = vmatprep.subr.mxu0 0.0
    %1581 = vmatpush1.msra.mxu0 0.0
    %1582 = vmatprep.subr.mxu0 0.0
    %1583 = vmatpush1.msra.mxu0 0.0
    %1584 = vmatprep.subr.mxu0 0.0
    %1585 = vmatpush1.msra.mxu0 0.0
    %1586 = vmatprep.subr.mxu0 0.0
    %1587 = vmatpush1.msra.mxu0 0.0
    %1588 = vmatprep.subr.mxu0 0.0
    %1589 = vmatpush1.msra.mxu0 0.0
    %1590 = vmatprep.subr.mxu0 0.0
    %1591 = vmatpush1.msra.mxu0 0.0
    %1592 = vmatprep.subr.mxu0 0.0
    %1593 = vmatpush1.msra.mxu0 0.0
    %1594 = vmatprep.subr.mxu0 0.0
    %1595 = vmatpush1.msra.mxu0 0.0
    %1596 = vmatprep.subr.mxu0 0.0
    %1597 = vmatpush1.msra.mxu0 0.0
    %1598 = vmatprep.subr.mxu0 0.0
    %1599 = vmatpush1.msra.mxu0 0.0
    %1600 = vmatprep.subr.mxu0 0.0
    %1601 = vmatpush1.msra.mxu0 0.0
    %1602 = vmatprep.subr.mxu0 0.0
    %1603 = vmatpush1.msra.mxu0 0.0
    %1604 = vmatprep.subr.mxu0 0.0
    %1605 = vmatpush1.msra.mxu0 0.0
    %1606 = vmatprep.subr.mxu0 0.0
    %1607 = vmatpush1.msra.mxu0 0.0
    %1608 = vmatprep.subr.mxu0 0.0
    %1609 = vmatpush1.msra.mxu0 0.0
    %1610 = vmatprep.subr.mxu0 0.0
    %1611 = vmatpush1.msra.mxu0 0.0
    %1612 = vmatprep.subr.mxu0 0.0
    %1613 = vmatpush1.msra.mxu0 0.0
    %1614 = vmatprep.mubr.f32.mxu0 0.0
    %1615 = vmatmul.mubr.f32.gmra.mrb[0].mxu0 %v1548
    %v1616 = vpop.f32.mrb[0].mxu0
    %v1617 = vadd.f32 0.0, %v1616
    %v1618 = vpop.f32.mrb[0].mxu0
    %1619 = vdwg.mxu0
    %v1621 = vrot.slane %v1617, 2
    %v1623 = vadd.f32 %v1227, %v1621
    %v1624 = vxor.u32 %v1623, 2147483648
    %v1625 = vmul.f32 %v1624, 1.442695
    %v1626 = vpow.pop %v1625
    %v1627 = vadd.f32 %v1626, 1.0
    %v1628 = vrcp.pop %v1627
    %v1629 = vmul.f32 1.0, %v1628
    %v1630 = vtanh.pop %v1623
    %v1632 = vrot.slane %v1537, 6
    %v1634 = vmul.f32 %v1629, %v1632
    %1636 = vrot.lane.b32.xlu0 %v1630, 64
    %v1637 = vpop.permute.xlu0 %1636
    %v1639 = vmul.f32 %v1629, %v1637
    %1641 = vrot.lane.b32.xlu0 %v1639, 32
    %v1642 = vpop.permute.xlu0 %1641
    %v1644 = vadd.f32 %v1634, %v1642
    %v1645 = vtanh.pop %v1644
    %1647 = vrot.lane.b32.xlu0 %v1645, 64
    %v1648 = vpop.permute.xlu0 %1647
    %v1650 = vmul.f32 %v1629, %v1648
    %v1652 = vrot.slane %v1650, 6
    %1653 = vrot.lane.b32.xlu0 %v1652, 32
    %v1654 = vpop.permute.xlu0 %1653
    %v1655 = vsel %vm1057, %v1654, 0
    %1657 = vmatprep.subr.mxu0 0.0
    %1658 = vmatpush1.msra.mxu0 %v1229
    %1659 = vmatprep.subr.mxu0 0.0
    %1660 = vmatpush1.msra.mxu0 %v1230
    %1661 = vmatprep.subr.mxu0 0.0
    %1662 = vmatpush1.msra.mxu0 %v1231
    %1663 = vmatprep.subr.mxu0 0.0
    %1664 = vmatpush1.msra.mxu0 %v1232
    %1665 = vmatprep.subr.mxu0 0.0
    %1666 = vmatpush1.msra.mxu0 0.0
    %1667 = vmatprep.subr.mxu0 0.0
    %1668 = vmatpush1.msra.mxu0 0.0
    %1669 = vmatprep.subr.mxu0 0.0
    %1670 = vmatpush1.msra.mxu0 0.0
    %1671 = vmatprep.subr.mxu0 0.0
    %1672 = vmatpush1.msra.mxu0 0.0
    %1673 = vmatprep.subr.mxu0 0.0
    %1674 = vmatpush1.msra.mxu0 0.0
    %1675 = vmatprep.subr.mxu0 0.0
    %1676 = vmatpush1.msra.mxu0 0.0
    %1677 = vmatprep.subr.mxu0 0.0
    %1678 = vmatpush1.msra.mxu0 0.0
    %1679 = vmatprep.subr.mxu0 0.0
    %1680 = vmatpush1.msra.mxu0 0.0
    %1681 = vmatprep.subr.mxu0 0.0
    %1682 = vmatpush1.msra.mxu0 0.0
    %1683 = vmatprep.subr.mxu0 0.0
    %1684 = vmatpush1.msra.mxu0 0.0
    %1685 = vmatprep.subr.mxu0 0.0
    %1686 = vmatpush1.msra.mxu0 0.0
    %1687 = vmatprep.subr.mxu0 0.0
    %1688 = vmatpush1.msra.mxu0 0.0
    %1689 = vmatprep.subr.mxu0 0.0
    %1690 = vmatpush1.msra.mxu0 0.0
    %1691 = vmatprep.subr.mxu0 0.0
    %1692 = vmatpush1.msra.mxu0 0.0
    %1693 = vmatprep.subr.mxu0 0.0
    %1694 = vmatpush1.msra.mxu0 0.0
    %1695 = vmatprep.subr.mxu0 0.0
    %1696 = vmatpush1.msra.mxu0 0.0
    %1697 = vmatprep.subr.mxu0 0.0
    %1698 = vmatpush1.msra.mxu0 0.0
    %1699 = vmatprep.subr.mxu0 0.0
    %1700 = vmatpush1.msra.mxu0 0.0
    %1701 = vmatprep.subr.mxu0 0.0
    %1702 = vmatpush1.msra.mxu0 0.0
    %1703 = vmatprep.subr.mxu0 0.0
    %1704 = vmatpush1.msra.mxu0 0.0
    %1705 = vmatprep.subr.mxu0 0.0
    %1706 = vmatpush1.msra.mxu0 0.0
    %1707 = vmatprep.subr.mxu0 0.0
    %1708 = vmatpush1.msra.mxu0 0.0
    %1709 = vmatprep.subr.mxu0 0.0
    %1710 = vmatpush1.msra.mxu0 0.0
    %1711 = vmatprep.subr.mxu0 0.0
    %1712 = vmatpush1.msra.mxu0 0.0
    %1713 = vmatprep.subr.mxu0 0.0
    %1714 = vmatpush1.msra.mxu0 0.0
    %1715 = vmatprep.subr.mxu0 0.0
    %1716 = vmatpush1.msra.mxu0 0.0
    %1717 = vmatprep.subr.mxu0 0.0
    %1718 = vmatpush1.msra.mxu0 0.0
    %1719 = vmatprep.subr.mxu0 0.0
    %1720 = vmatpush1.msra.mxu0 0.0
    %1721 = vmatprep.mubr.f32.mxu0 0.0
    %1722 = vmatmul.mubr.f32.gmra.mrb[0].mxu0 %v1655
    %v1723 = vpop.f32.mrb[0].mxu0
    %v1724 = vadd.f32 0.0, %v1723
    %v1725 = vpop.f32.mrb[0].mxu0
    %1726 = vdwg.mxu0
    %v1727 = vadd.f32 %v1228, %v1724
    %v1728 = vxor.u32 %v1727, 2147483648
    %v1729 = vmul.f32 %v1728, 1.442695
    %v1730 = vpow.pop %v1729
    %v1731 = vadd.f32 %v1730, 1.0
    %v1732 = vrcp.pop %v1731
    %v1733 = vmul.f32 1.0, %v1732
    %v1734 = vtanh.pop %v1727
    %v1736 = vrot.slane %v1644, 6
    %v1738 = vmul.f32 %v1733, %v1736
    %1740 = vrot.lane.b32.xlu0 %v1734, 64
    %v1741 = vpop.permute.xlu0 %1740
    %v1743 = vmul.f32 %v1733, %v1741
    %1745 = vrot.lane.b32.xlu0 %v1743, 32
    %v1746 = vpop.permute.xlu0 %1745
    %v1748 = vadd.f32 %v1738, %v1746
    %v1749 = vtanh.pop %v1748
    %1751 = vrot.lane.b32.xlu0 %v1749, 64
    %v1752 = vpop.permute.xlu0 %1751
    %v1754 = vmul.f32 %v1733, %v1752
    %1756 = vrot.lane.b32.xlu0 %v1754, 32
    %v1757 = vpop.permute.xlu0 %1756
    %v1758 = vsel %vm1057, %v1757, 0
    %1760 = vmatprep.subr.mxu0 0.0
    %1761 = vmatpush1.msra.mxu0 %v1229
    %1762 = vmatprep.subr.mxu0 0.0
    %1763 = vmatpush1.msra.mxu0 %v1230
    %1764 = vmatprep.subr.mxu0 0.0
    %1765 = vmatpush1.msra.mxu0 %v1231
    %1766 = vmatprep.subr.mxu0 0.0
    %1767 = vmatpush1.msra.mxu0 %v1232
    %1768 = vmatprep.subr.mxu0 0.0
    %1769 = vmatpush1.msra.mxu0 0.0
    %1770 = vmatprep.subr.mxu0 0.0
    %1771 = vmatpush1.msra.mxu0 0.0
    %1772 = vmatprep.subr.mxu0 0.0
    %1773 = vmatpush1.msra.mxu0 0.0
    %1774 = vmatprep.subr.mxu0 0.0
    %1775 = vmatpush1.msra.mxu0 0.0
    %1776 = vmatprep.subr.mxu0 0.0
    %1777 = vmatpush1.msra.mxu0 0.0
    %1778 = vmatprep.subr.mxu0 0.0
    %1779 = vmatpush1.msra.mxu0 0.0
    %1780 = vmatprep.subr.mxu0 0.0
    %1781 = vmatpush1.msra.mxu0 0.0
    %1782 = vmatprep.subr.mxu0 0.0
    %1783 = vmatpush1.msra.mxu0 0.0
    %1784 = vmatprep.subr.mxu0 0.0
    %1785 = vmatpush1.msra.mxu0 0.0
    %1786 = vmatprep.subr.mxu0 0.0
    %1787 = vmatpush1.msra.mxu0 0.0
    %1788 = vmatprep.subr.mxu0 0.0
    %1789 = vmatpush1.msra.mxu0 0.0
    %1790 = vmatprep.subr.mxu0 0.0
    %1791 = vmatpush1.msra.mxu0 0.0
    %1792 = vmatprep.subr.mxu0 0.0
    %1793 = vmatpush1.msra.mxu0 0.0
    %1794 = vmatprep.subr.mxu0 0.0
    %1795 = vmatpush1.msra.mxu0 0.0
    %1796 = vmatprep.subr.mxu0 0.0
    %1797 = vmatpush1.msra.mxu0 0.0
    %1798 = vmatprep.subr.mxu0 0.0
    %1799 = vmatpush1.msra.mxu0 0.0
    %1800 = vmatprep.subr.mxu0 0.0
    %1801 = vmatpush1.msra.mxu0 0.0
    %1802 = vmatprep.subr.mxu0 0.0
    %1803 = vmatpush1.msra.mxu0 0.0
    %1804 = vmatprep.subr.mxu0 0.0
    %1805 = vmatpush1.msra.mxu0 0.0
    %1806 = vmatprep.subr.mxu0 0.0
    %1807 = vmatpush1.msra.mxu0 0.0
    %1808 = vmatprep.subr.mxu0 0.0
    %1809 = vmatpush1.msra.mxu0 0.0
    %1810 = vmatprep.subr.mxu0 0.0
    %1811 = vmatpush1.msra.mxu0 0.0
    %1812 = vmatprep.subr.mxu0 0.0
    %1813 = vmatpush1.msra.mxu0 0.0
    %1814 = vmatprep.subr.mxu0 0.0
    %1815 = vmatpush1.msra.mxu0 0.0
    %1816 = vmatprep.subr.mxu0 0.0
    %1817 = vmatpush1.msra.mxu0 0.0
    %1818 = vmatprep.subr.mxu0 0.0
    %1819 = vmatpush1.msra.mxu0 0.0
    %1820 = vmatprep.subr.mxu0 0.0
    %1821 = vmatpush1.msra.mxu0 0.0
    %1822 = vmatprep.subr.mxu0 0.0
    %1823 = vmatpush1.msra.mxu0 0.0
    %1824 = vmatprep.mubr.f32.mxu0 0.0
    %1825 = vmatmul.mubr.f32.gmra.mrb[0].mxu0 %v1758
    %v1826 = vpop.f32.mrb[0].mxu0
    %v1827 = vadd.f32 0.0, %v1826
    %v1828 = vpop.f32.mrb[0].mxu0
    %1829 = vdwg.mxu0
    %v1831 = vrot.slane %v1827, 6
    %v1833 = vadd.f32 %v1228, %v1831
    %v1834 = vxor.u32 %v1833, 2147483648
    %v1835 = vmul.f32 %v1834, 1.442695
    %v1836 = vpow.pop %v1835
    %v1837 = vadd.f32 %v1836, 1.0
    %v1838 = vrcp.pop %v1837
    %v1839 = vmul.f32 1.0, %v1838
    %v1840 = vtanh.pop %v1833
    %v1842 = vrot.slane %v1748, 6
    %v1844 = vmul.f32 %v1839, %v1842
    %1846 = vrot.lane.b32.xlu0 %v1840, 64
    %v1847 = vpop.permute.xlu0 %1846
    %v1849 = vmul.f32 %v1839, %v1847
    %1851 = vrot.lane.b32.xlu0 %v1849, 32
    %v1852 = vpop.permute.xlu0 %1851
    %v1854 = vadd.f32 %v1844, %v1852
    %v1855 = vtanh.pop %v1854
    %1857 = vrot.lane.b32.xlu0 %v1855, 64
    %v1858 = vpop.permute.xlu0 %1857
    %v1860 = vmul.f32 %v1839, %v1858
    %v1862 = vrot.slane %v1860, 2
    %1863 = vrot.lane.b32.xlu0 %v1862, 32
    %v1864 = vpop.permute.xlu0 %1863
    %v1865 = vsel %vm1057, %v1864, 0
    %1867 = vmatprep.subr.mxu0 0.0
    %1868 = vmatpush1.msra.mxu0 %v1229
    %1869 = vmatprep.subr.mxu0 0.0
    %1870 = vmatpush1.msra.mxu0 %v1230
    %1871 = vmatprep.subr.mxu0 0.0
    %1872 = vmatpush1.msra.mxu0 %v1231
    %1873 = vmatprep.subr.mxu0 0.0
    %1874 = vmatpush1.msra.mxu0 %v1232
    %1875 = vmatprep.subr.mxu0 0.0
    %1876 = vmatpush1.msra.mxu0 0.0
    %1877 = vmatprep.subr.mxu0 0.0
    %1878 = vmatpush1.msra.mxu0 0.0
    %1879 = vmatprep.subr.mxu0 0.0
    %1880 = vmatpush1.msra.mxu0 0.0
    %1881 = vmatprep.subr.mxu0 0.0
    %1882 = vmatpush1.msra.mxu0 0.0
    %1883 = vmatprep.subr.mxu0 0.0
    %1884 = vmatpush1.msra.mxu0 0.0
    %1885 = vmatprep.subr.mxu0 0.0
    %1886 = vmatpush1.msra.mxu0 0.0
    %1887 = vmatprep.subr.mxu0 0.0
    %1888 = vmatpush1.msra.mxu0 0.0
    %1889 = vmatprep.subr.mxu0 0.0
    %1890 = vmatpush1.msra.mxu0 0.0
    %1891 = vmatprep.subr.mxu0 0.0
    %1892 = vmatpush1.msra.mxu0 0.0
    %1893 = vmatprep.subr.mxu0 0.0
    %1894 = vmatpush1.msra.mxu0 0.0
    %1895 = vmatprep.subr.mxu0 0.0
    %1896 = vmatpush1.msra.mxu0 0.0
    %1897 = vmatprep.subr.mxu0 0.0
    %1898 = vmatpush1.msra.mxu0 0.0
    %1899 = vmatprep.subr.mxu0 0.0
    %1900 = vmatpush1.msra.mxu0 0.0
    %1901 = vmatprep.subr.mxu0 0.0
    %1902 = vmatpush1.msra.mxu0 0.0
    %1903 = vmatprep.subr.mxu0 0.0
    %1904 = vmatpush1.msra.mxu0 0.0
    %1905 = vmatprep.subr.mxu0 0.0
    %1906 = vmatpush1.msra.mxu0 0.0
    %1907 = vmatprep.subr.mxu0 0.0
    %1908 = vmatpush1.msra.mxu0 0.0
    %1909 = vmatprep.subr.mxu0 0.0
    %1910 = vmatpush1.msra.mxu0 0.0
    %1911 = vmatprep.subr.mxu0 0.0
    %1912 = vmatpush1.msra.mxu0 0.0
    %1913 = vmatprep.subr.mxu0 0.0
    %1914 = vmatpush1.msra.mxu0 0.0
    %1915 = vmatprep.subr.mxu0 0.0
    %1916 = vmatpush1.msra.mxu0 0.0
    %1917 = vmatprep.subr.mxu0 0.0
    %1918 = vmatpush1.msra.mxu0 0.0
    %1919 = vmatprep.subr.mxu0 0.0
    %1920 = vmatpush1.msra.mxu0 0.0
    %1921 = vmatprep.subr.mxu0 0.0
    %1922 = vmatpush1.msra.mxu0 0.0
    %1923 = vmatprep.subr.mxu0 0.0
    %1924 = vmatpush1.msra.mxu0 0.0
    %1925 = vmatprep.subr.mxu0 0.0
    %1926 = vmatpush1.msra.mxu0 0.0
    %1927 = vmatprep.subr.mxu0 0.0
    %1928 = vmatpush1.msra.mxu0 0.0
    %1929 = vmatprep.subr.mxu0 0.0
    %1930 = vmatpush1.msra.mxu0 0.0
    %1931 = vmatprep.mubr.f32.mxu0 0.0
    %1932 = vmatmul.mubr.f32.gmra.mrb[0].mxu0 %v1865
    %v1933 = vpop.f32.mrb[0].mxu0
    %v1934 = vadd.f32 0.0, %v1933
    %v1935 = vpop.f32.mrb[0].mxu0
    %1936 = vdwg.mxu0
    %v1938 = vrot.slane %v1934, 4
    %v1940 = vadd.f32 %v1228, %v1938
    %v1941 = vxor.u32 %v1940, 2147483648
    %v1942 = vmul.f32 %v1941, 1.442695
    %v1943 = vpow.pop %v1942
    %v1944 = vadd.f32 %v1943, 1.0
    %v1945 = vrcp.pop %v1944
    %v1946 = vmul.f32 1.0, %v1945
    %v1947 = vtanh.pop %v1940
    %v1949 = vrot.slane %v1854, 6
    %v1951 = vmul.f32 %v1946, %v1949
    %1953 = vrot.lane.b32.xlu0 %v1947, 64
    %v1954 = vpop.permute.xlu0 %1953
    %v1956 = vmul.f32 %v1946, %v1954
    %1958 = vrot.lane.b32.xlu0 %v1956, 32
    %v1959 = vpop.permute.xlu0 %1958
    %v1961 = vadd.f32 %v1951, %v1959
    %v1962 = vtanh.pop %v1961
    %1964 = vrot.lane.b32.xlu0 %v1962, 64
    %v1965 = vpop.permute.xlu0 %1964
    %v1967 = vmul.f32 %v1946, %v1965
    %v1969 = vrot.slane %v1967, 4
    %1970 = vrot.lane.b32.xlu0 %v1969, 32
    %v1971 = vpop.permute.xlu0 %1970
    %v1972 = vsel %vm1057, %v1971, 0
    %1974 = vmatprep.subr.mxu0 0.0
    %1975 = vmatpush1.msra.mxu0 %v1229
    %1976 = vmatprep.subr.mxu0 0.0
    %1977 = vmatpush1.msra.mxu0 %v1230
    %1978 = vmatprep.subr.mxu0 0.0
    %1979 = vmatpush1.msra.mxu0 %v1231
    %1980 = vmatprep.subr.mxu0 0.0
    %1981 = vmatpush1.msra.mxu0 %v1232
    %1982 = vmatprep.subr.mxu0 0.0
    %1983 = vmatpush1.msra.mxu0 0.0
    %1984 = vmatprep.subr.mxu0 0.0
    %1985 = vmatpush1.msra.mxu0 0.0
    %1986 = vmatprep.subr.mxu0 0.0
    %1987 = vmatpush1.msra.mxu0 0.0
    %1988 = vmatprep.subr.mxu0 0.0
    %1989 = vmatpush1.msra.mxu0 0.0
    %1990 = vmatprep.subr.mxu0 0.0
    %1991 = vmatpush1.msra.mxu0 0.0
    %1992 = vmatprep.subr.mxu0 0.0
    %1993 = vmatpush1.msra.mxu0 0.0
    %1994 = vmatprep.subr.mxu0 0.0
    %1995 = vmatpush1.msra.mxu0 0.0
    %1996 = vmatprep.subr.mxu0 0.0
    %1997 = vmatpush1.msra.mxu0 0.0
    %1998 = vmatprep.subr.mxu0 0.0
    %1999 = vmatpush1.msra.mxu0 0.0
    %2000 = vmatprep.subr.mxu0 0.0
    %2001 = vmatpush1.msra.mxu0 0.0
    %2002 = vmatprep.subr.mxu0 0.0
    %2003 = vmatpush1.msra.mxu0 0.0
    %2004 = vmatprep.subr.mxu0 0.0
    %2005 = vmatpush1.msra.mxu0 0.0
    %2006 = vmatprep.subr.mxu0 0.0
    %2007 = vmatpush1.msra.mxu0 0.0
    %2008 = vmatprep.subr.mxu0 0.0
    %2009 = vmatpush1.msra.mxu0 0.0
    %2010 = vmatprep.subr.mxu0 0.0
    %2011 = vmatpush1.msra.mxu0 0.0
    %2012 = vmatprep.subr.mxu0 0.0
    %2013 = vmatpush1.msra.mxu0 0.0
    %2014 = vmatprep.subr.mxu0 0.0
    %2015 = vmatpush1.msra.mxu0 0.0
    %2016 = vmatprep.subr.mxu0 0.0
    %2017 = vmatpush1.msra.mxu0 0.0
    %2018 = vmatprep.subr.mxu0 0.0
    %2019 = vmatpush1.msra.mxu0 0.0
    %2020 = vmatprep.subr.mxu0 0.0
    %2021 = vmatpush1.msra.mxu0 0.0
    %2022 = vmatprep.subr.mxu0 0.0
    %2023 = vmatpush1.msra.mxu0 0.0
    %2024 = vmatprep.subr.mxu0 0.0
    %2025 = vmatpush1.msra.mxu0 0.0
    %2026 = vmatprep.subr.mxu0 0.0
    %2027 = vmatpush1.msra.mxu0 0.0
    %2028 = vmatprep.subr.mxu0 0.0
    %2029 = vmatpush1.msra.mxu0 0.0
    %2030 = vmatprep.subr.mxu0 0.0
    %2031 = vmatpush1.msra.mxu0 0.0
    %2032 = vmatprep.subr.mxu0 0.0
    %2033 = vmatpush1.msra.mxu0 0.0
    %2034 = vmatprep.subr.mxu0 0.0
    %2035 = vmatpush1.msra.mxu0 0.0
    %2036 = vmatprep.subr.mxu0 0.0
    %2037 = vmatpush1.msra.mxu0 0.0
    %2038 = vmatprep.mubr.f32.mxu0 0.0
    %2039 = vmatmul.mubr.f32.gmra.mrb[0].mxu0 %v1972
    %v2040 = vpop.f32.mrb[0].mxu0
    %v2041 = vadd.f32 0.0, %v2040
    %v2042 = vpop.f32.mrb[0].mxu0
    %2043 = vdwg.mxu0
    %v2045 = vrot.slane %v2041, 2
    %v2047 = vadd.f32 %v1228, %v2045
    %v2048 = vxor.u32 %v2047, 2147483648
    %v2049 = vmul.f32 %v2048, 1.442695
    %v2050 = vpow.pop %v2049
    %v2051 = vadd.f32 %v2050, 1.0
    %v2052 = vrcp.pop %v2051
    %v2053 = vmul.f32 1.0, %v2052
    %v2054 = vtanh.pop %v2047
    %v2056 = vrot.slane %v1961, 6
    %v2058 = vmul.f32 %v2053, %v2056
    %2060 = vrot.lane.b32.xlu0 %v2054, 64
    %v2061 = vpop.permute.xlu0 %2060
    %v2063 = vmul.f32 %v2053, %v2061
    %2065 = vrot.lane.b32.xlu0 %v2063, 32
    %v2066 = vpop.permute.xlu0 %2065
    %v2068 = vadd.f32 %v2058, %v2066
    %v2069 = vtanh.pop %v2068
    %2071 = vrot.lane.b32.xlu0 %v2069, 64
    %v2072 = vpop.permute.xlu0 %2071
    %v2074 = vmul.f32 %v2053, %v2072
    %v2075 = vld [vmem:[%s10] sm:$0xff]
    %v2076 = vld [vmem:[%s10 + $0x8] sm:$0xff]
    %v2077 = vld [vmem:[%s10 + $0x10] sm:$0xff]
    %v2078 = vld [vmem:[%s10 + $0x18] sm:$0xff]
    %v2079 = vld [vmem:[%s11] sm:$0xff]
    %v2080 = vld [vmem:[%s11 + $0x8] sm:$0xff]
    %v2081 = vld [vmem:[%s11 + $0x10] sm:$0xff]
    %v2082 = vld [vmem:[%s11 + $0x18] sm:$0xff]
    %v2083 = vrot.slane %v1046, 6
    %v2084 = vsel %vm1057, %v2083, 0
    %2086 = vmatprep.subr.mxu0 0.0
    %2087 = vmatpush1.msra.mxu0 %v2079
    %2088 = vmatprep.subr.mxu0 0.0
    %2089 = vmatpush1.msra.mxu0 %v2080
    %2090 = vmatprep.subr.mxu0 0.0
    %2091 = vmatpush1.msra.mxu0 %v2081
    %2092 = vmatprep.subr.mxu0 0.0
    %2093 = vmatpush1.msra.mxu0 %v2082
    %2094 = vmatprep.subr.mxu0 0.0
    %2095 = vmatpush1.msra.mxu0 0.0
    %2096 = vmatprep.subr.mxu0 0.0
    %2097 = vmatpush1.msra.mxu0 0.0
    %2098 = vmatprep.subr.mxu0 0.0
    %2099 = vmatpush1.msra.mxu0 0.0
    %2100 = vmatprep.subr.mxu0 0.0
    %2101 = vmatpush1.msra.mxu0 0.0
    %2102 = vmatprep.subr.mxu0 0.0
    %2103 = vmatpush1.msra.mxu0 0.0
    %2104 = vmatprep.subr.mxu0 0.0
    %2105 = vmatpush1.msra.mxu0 0.0
    %2106 = vmatprep.subr.mxu0 0.0
    %2107 = vmatpush1.msra.mxu0 0.0
    %2108 = vmatprep.subr.mxu0 0.0
    %2109 = vmatpush1.msra.mxu0 0.0
    %2110 = vmatprep.subr.mxu0 0.0
    %2111 = vmatpush1.msra.mxu0 0.0
    %2112 = vmatprep.subr.mxu0 0.0
    %2113 = vmatpush1.msra.mxu0 0.0
    %2114 = vmatprep.subr.mxu0 0.0
    %2115 = vmatpush1.msra.mxu0 0.0
    %2116 = vmatprep.subr.mxu0 0.0
    %2117 = vmatpush1.msra.mxu0 0.0
    %2118 = vmatprep.subr.mxu0 0.0
    %2119 = vmatpush1.msra.mxu0 0.0
    %2120 = vmatprep.subr.mxu0 0.0
    %2121 = vmatpush1.msra.mxu0 0.0
    %2122 = vmatprep.subr.mxu0 0.0
    %2123 = vmatpush1.msra.mxu0 0.0
    %2124 = vmatprep.subr.mxu0 0.0
    %2125 = vmatpush1.msra.mxu0 0.0
    %2126 = vmatprep.subr.mxu0 0.0
    %2127 = vmatpush1.msra.mxu0 0.0
    %2128 = vmatprep.subr.mxu0 0.0
    %2129 = vmatpush1.msra.mxu0 0.0
    %2130 = vmatprep.subr.mxu0 0.0
    %2131 = vmatpush1.msra.mxu0 0.0
    %2132 = vmatprep.subr.mxu0 0.0
    %2133 = vmatpush1.msra.mxu0 0.0
    %2134 = vmatprep.subr.mxu0 0.0
    %2135 = vmatpush1.msra.mxu0 0.0
    %2136 = vmatprep.subr.mxu0 0.0
    %2137 = vmatpush1.msra.mxu0 0.0
    %2138 = vmatprep.subr.mxu0 0.0
    %2139 = vmatpush1.msra.mxu0 0.0
    %2140 = vmatprep.subr.mxu0 0.0
    %2141 = vmatpush1.msra.mxu0 0.0
    %2142 = vmatprep.subr.mxu0 0.0
    %2143 = vmatpush1.msra.mxu0 0.0
    %2144 = vmatprep.subr.mxu0 0.0
    %2145 = vmatpush1.msra.mxu0 0.0
    %2146 = vmatprep.subr.mxu0 0.0
    %2147 = vmatpush1.msra.mxu0 0.0
    %2148 = vmatprep.subr.mxu0 0.0
    %2149 = vmatpush1.msra.mxu0 0.0
    %2150 = vmatprep.mubr.f32.mxu0 0.0
    %2151 = vmatmul.mubr.f32.gmra.mrb[0].mxu0 %v2084
    %v2152 = vpop.f32.mrb[0].mxu0
    %v2153 = vadd.f32 0.0, %v2152
    %v2154 = vpop.f32.mrb[0].mxu0
    %2155 = vdwg.mxu0
    %v2156 = vrot.slane %v946, 6
    %v2157 = vsel %vm1057, %v2156, 0
    %2159 = vmatprep.subr.mxu0 0.0
    %2160 = vmatpush1.msra.mxu0 %v2075
    %2161 = vmatprep.subr.mxu0 0.0
    %2162 = vmatpush1.msra.mxu0 %v2076
    %2163 = vmatprep.subr.mxu0 0.0
    %2164 = vmatpush1.msra.mxu0 %v2077
    %2165 = vmatprep.subr.mxu0 0.0
    %2166 = vmatpush1.msra.mxu0 %v2078
    %2167 = vmatprep.subr.mxu0 0.0
    %2168 = vmatpush1.msra.mxu0 0.0
    %2169 = vmatprep.subr.mxu0 0.0
    %2170 = vmatpush1.msra.mxu0 0.0
    %2171 = vmatprep.subr.mxu0 0.0
    %2172 = vmatpush1.msra.mxu0 0.0
    %2173 = vmatprep.subr.mxu0 0.0
    %2174 = vmatpush1.msra.mxu0 0.0
    %2175 = vmatprep.subr.mxu0 0.0
    %2176 = vmatpush1.msra.mxu0 0.0
    %2177 = vmatprep.subr.mxu0 0.0
    %2178 = vmatpush1.msra.mxu0 0.0
    %2179 = vmatprep.subr.mxu0 0.0
    %2180 = vmatpush1.msra.mxu0 0.0
    %2181 = vmatprep.subr.mxu0 0.0
    %2182 = vmatpush1.msra.mxu0 0.0
    %2183 = vmatprep.subr.mxu0 0.0
    %2184 = vmatpush1.msra.mxu0 0.0
    %2185 = vmatprep.subr.mxu0 0.0
    %2186 = vmatpush1.msra.mxu0 0.0
    %2187 = vmatprep.subr.mxu0 0.0
    %2188 = vmatpush1.msra.mxu0 0.0
    %2189 = vmatprep.subr.mxu0 0.0
    %2190 = vmatpush1.msra.mxu0 0.0
    %2191 = vmatprep.subr.mxu0 0.0
    %2192 = vmatpush1.msra.mxu0 0.0
    %2193 = vmatprep.subr.mxu0 0.0
    %2194 = vmatpush1.msra.mxu0 0.0
    %2195 = vmatprep.subr.mxu0 0.0
    %2196 = vmatpush1.msra.mxu0 0.0
    %2197 = vmatprep.subr.mxu0 0.0
    %2198 = vmatpush1.msra.mxu0 0.0
    %2199 = vmatprep.subr.mxu0 0.0
    %2200 = vmatpush1.msra.mxu0 0.0
    %2201 = vmatprep.subr.mxu0 0.0
    %2202 = vmatpush1.msra.mxu0 0.0
    %2203 = vmatprep.subr.mxu0 0.0
    %2204 = vmatpush1.msra.mxu0 0.0
    %2205 = vmatprep.subr.mxu0 0.0
    %2206 = vmatpush1.msra.mxu0 0.0
    %2207 = vmatprep.subr.mxu0 0.0
    %2208 = vmatpush1.msra.mxu0 0.0
    %2209 = vmatprep.subr.mxu0 0.0
    %2210 = vmatpush1.msra.mxu0 0.0
    %2211 = vmatprep.subr.mxu0 0.0
    %2212 = vmatpush1.msra.mxu0 0.0
    %2213 = vmatprep.subr.mxu0 0.0
    %2214 = vmatpush1.msra.mxu0 0.0
    %2215 = vmatprep.subr.mxu0 0.0
    %2216 = vmatpush1.msra.mxu0 0.0
    %2217 = vmatprep.subr.mxu0 0.0
    %2218 = vmatpush1.msra.mxu0 0.0
    %2219 = vmatprep.subr.mxu0 0.0
    %2220 = vmatpush1.msra.mxu0 0.0
    %2221 = vmatprep.subr.mxu0 0.0
    %2222 = vmatpush1.msra.mxu0 0.0
    %2223 = vmatprep.mubr.f32.mxu0 0.0
    %2224 = vmatmul.mubr.f32.gmra.mrb[0].mxu0 %v2157
    %v2225 = vpop.f32.mrb[0].mxu0
    %v2226 = vadd.f32 %v2153, %v2225
    %v2227 = vpop.f32.mrb[0].mxu0
    %2228 = vdwg.mxu0
    %v2229 = vld [vmem:[%s13] sm:$0x1]
    %v2231 = vlaneseq
    %v2232 = vshrl.u32 %v2231, 7
    %v2233 = vsub.s32 0, %v2232
    %v2234 = vrot.slane %v2229, %v2233
    %v2236 = vadd.f32 %v2226, %v2234
    %v2237 = vld [vmem:[%s12] sm:$0xff]
    %v2238 = vld [vmem:[%s12 + $0x8] sm:$0xff]
    %v2239 = vld [vmem:[%s12 + $0x10] sm:$0xff]
    %v2240 = vld [vmem:[%s12 + $0x18] sm:$0xff]
    %v2242 = vrot.slane %v2074, 6
    %2243 = vrot.lane.b32.xlu0 %v2242, 32
    %v2244 = vpop.permute.xlu0 %2243
    %v2245 = vsel %vm1057, %v2244, 0
    %2247 = vmatprep.subr.mxu0 0.0
    %2248 = vmatpush1.msra.mxu0 %v2237
    %2249 = vmatprep.subr.mxu0 0.0
    %2250 = vmatpush1.msra.mxu0 %v2238
    %2251 = vmatprep.subr.mxu0 0.0
    %2252 = vmatpush1.msra.mxu0 %v2239
    %2253 = vmatprep.subr.mxu0 0.0
    %2254 = vmatpush1.msra.mxu0 %v2240
    %2255 = vmatprep.subr.mxu0 0.0
    %2256 = vmatpush1.msra.mxu0 0.0
    %2257 = vmatprep.subr.mxu0 0.0
    %2258 = vmatpush1.msra.mxu0 0.0
    %2259 = vmatprep.subr.mxu0 0.0
    %2260 = vmatpush1.msra.mxu0 0.0
    %2261 = vmatprep.subr.mxu0 0.0
    %2262 = vmatpush1.msra.mxu0 0.0
    %2263 = vmatprep.subr.mxu0 0.0
    %2264 = vmatpush1.msra.mxu0 0.0
    %2265 = vmatprep.subr.mxu0 0.0
    %2266 = vmatpush1.msra.mxu0 0.0
    %2267 = vmatprep.subr.mxu0 0.0
    %2268 = vmatpush1.msra.mxu0 0.0
    %2269 = vmatprep.subr.mxu0 0.0
    %2270 = vmatpush1.msra.mxu0 0.0
    %2271 = vmatprep.subr.mxu0 0.0
    %2272 = vmatpush1.msra.mxu0 0.0
    %2273 = vmatprep.subr.mxu0 0.0
    %2274 = vmatpush1.msra.mxu0 0.0
    %2275 = vmatprep.subr.mxu0 0.0
    %2276 = vmatpush1.msra.mxu0 0.0
    %2277 = vmatprep.subr.mxu0 0.0
    %2278 = vmatpush1.msra.mxu0 0.0
    %2279 = vmatprep.subr.mxu0 0.0
    %2280 = vmatpush1.msra.mxu0 0.0
    %2281 = vmatprep.subr.mxu0 0.0
    %2282 = vmatpush1.msra.mxu0 0.0
    %2283 = vmatprep.subr.mxu0 0.0
    %2284 = vmatpush1.msra.mxu0 0.0
    %2285 = vmatprep.subr.mxu0 0.0
    %2286 = vmatpush1.msra.mxu0 0.0
    %2287 = vmatprep.subr.mxu0 0.0
    %2288 = vmatpush1.msra.mxu0 0.0
    %2289 = vmatprep.subr.mxu0 0.0
    %2290 = vmatpush1.msra.mxu0 0.0
    %2291 = vmatprep.subr.mxu0 0.0
    %2292 = vmatpush1.msra.mxu0 0.0
    %2293 = vmatprep.subr.mxu0 0.0
    %2294 = vmatpush1.msra.mxu0 0.0
    %2295 = vmatprep.subr.mxu0 0.0
    %2296 = vmatpush1.msra.mxu0 0.0
    %2297 = vmatprep.subr.mxu0 0.0
    %2298 = vmatpush1.msra.mxu0 0.0
    %2299 = vmatprep.subr.mxu0 0.0
    %2300 = vmatpush1.msra.mxu0 0.0
    %2301 = vmatprep.subr.mxu0 0.0
    %2302 = vmatpush1.msra.mxu0 0.0
    %2303 = vmatprep.subr.mxu0 0.0
    %2304 = vmatpush1.msra.mxu0 0.0
    %2305 = vmatprep.subr.mxu0 0.0
    %2306 = vmatpush1.msra.mxu0 0.0
    %2307 = vmatprep.subr.mxu0 0.0
    %2308 = vmatpush1.msra.mxu0 0.0
    %2309 = vmatprep.subr.mxu0 0.0
    %2310 = vmatpush1.msra.mxu0 0.0
    %2311 = vmatprep.mubr.f32.mxu0 0.0
    %2312 = vmatmul.mubr.f32.gmra.mrb[0].mxu0 %v2245
    %v2313 = vpop.f32.mrb[0].mxu0
    %v2314 = vadd.f32 0.0, %v2313
    %v2315 = vpop.f32.mrb[0].mxu0
    %2316 = vdwg.mxu0
    %v2317 = vadd.f32 %v2236, %v2314
    %v2318 = vxor.u32 %v2317, 2147483648
    %v2319 = vmul.f32 %v2318, 1.442695
    %v2320 = vpow.pop %v2319
    %v2321 = vadd.f32 %v2320, 1.0
    %v2322 = vrcp.pop %v2321
    %v2323 = vmul.f32 1.0, %v2322
    %v2324 = vtanh.pop %v2317
    %v2326 = vrot.slane %v2068, 6
    %v2328 = vmul.f32 %v2323, %v2326
    %2330 = vrot.lane.b32.xlu0 %v2324, 64
    %v2331 = vpop.permute.xlu0 %2330
    %v2333 = vmul.f32 %v2323, %v2331
    %2335 = vrot.lane.b32.xlu0 %v2333, 32
    %v2336 = vpop.permute.xlu0 %2335
    %v2338 = vadd.f32 %v2328, %v2336
    %v2339 = vtanh.pop %v2338
    %2341 = vrot.lane.b32.xlu0 %v2339, 64
    %v2342 = vpop.permute.xlu0 %2341
    %v2344 = vmul.f32 %v2323, %v2342
    %2346 = vrot.lane.b32.xlu0 %v2344, 32
    %v2347 = vpop.permute.xlu0 %2346
    %v2348 = vsel %vm1057, %v2347, 0
    %2350 = vmatprep.subr.mxu0 0.0
    %2351 = vmatpush1.msra.mxu0 %v2237
    %2352 = vmatprep.subr.mxu0 0.0
    %2353 = vmatpush1.msra.mxu0 %v2238
    %2354 = vmatprep.subr.mxu0 0.0
    %2355 = vmatpush1.msra.mxu0 %v2239
    %2356 = vmatprep.subr.mxu0 0.0
    %2357 = vmatpush1.msra.mxu0 %v2240
    %2358 = vmatprep.subr.mxu0 0.0
    %2359 = vmatpush1.msra.mxu0 0.0
    %2360 = vmatprep.subr.mxu0 0.0
    %2361 = vmatpush1.msra.mxu0 0.0
    %2362 = vmatprep.subr.mxu0 0.0
    %2363 = vmatpush1.msra.mxu0 0.0
    %2364 = vmatprep.subr.mxu0 0.0
    %2365 = vmatpush1.msra.mxu0 0.0
    %2366 = vmatprep.subr.mxu0 0.0
    %2367 = vmatpush1.msra.mxu0 0.0
    %2368 = vmatprep.subr.mxu0 0.0
    %2369 = vmatpush1.msra.mxu0 0.0
    %2370 = vmatprep.subr.mxu0 0.0
    %2371 = vmatpush1.msra.mxu0 0.0
    %2372 = vmatprep.subr.mxu0 0.0
    %2373 = vmatpush1.msra.mxu0 0.0
    %2374 = vmatprep.subr.mxu0 0.0
    %2375 = vmatpush1.msra.mxu0 0.0
    %2376 = vmatprep.subr.mxu0 0.0
    %2377 = vmatpush1.msra.mxu0 0.0
    %2378 = vmatprep.subr.mxu0 0.0
    %2379 = vmatpush1.msra.mxu0 0.0
    %2380 = vmatprep.subr.mxu0 0.0
    %2381 = vmatpush1.msra.mxu0 0.0
    %2382 = vmatprep.subr.mxu0 0.0
    %2383 = vmatpush1.msra.mxu0 0.0
    %2384 = vmatprep.subr.mxu0 0.0
    %2385 = vmatpush1.msra.mxu0 0.0
    %2386 = vmatprep.subr.mxu0 0.0
    %2387 = vmatpush1.msra.mxu0 0.0
    %2388 = vmatprep.subr.mxu0 0.0
    %2389 = vmatpush1.msra.mxu0 0.0
    %2390 = vmatprep.subr.mxu0 0.0
    %2391 = vmatpush1.msra.mxu0 0.0
    %2392 = vmatprep.subr.mxu0 0.0
    %2393 = vmatpush1.msra.mxu0 0.0
    %2394 = vmatprep.subr.mxu0 0.0
    %2395 = vmatpush1.msra.mxu0 0.0
    %2396 = vmatprep.subr.mxu0 0.0
    %2397 = vmatpush1.msra.mxu0 0.0
    %2398 = vmatprep.subr.mxu0 0.0
    %2399 = vmatpush1.msra.mxu0 0.0
    %2400 = vmatprep.subr.mxu0 0.0
    %2401 = vmatpush1.msra.mxu0 0.0
    %2402 = vmatprep.subr.mxu0 0.0
    %2403 = vmatpush1.msra.mxu0 0.0
    %2404 = vmatprep.subr.mxu0 0.0
    %2405 = vmatpush1.msra.mxu0 0.0
    %2406 = vmatprep.subr.mxu0 0.0
    %2407 = vmatpush1.msra.mxu0 0.0
    %2408 = vmatprep.subr.mxu0 0.0
    %2409 = vmatpush1.msra.mxu0 0.0
    %2410 = vmatprep.subr.mxu0 0.0
    %2411 = vmatpush1.msra.mxu0 0.0
    %2412 = vmatprep.subr.mxu0 0.0
    %2413 = vmatpush1.msra.mxu0 0.0
    %2414 = vmatprep.mubr.f32.mxu0 0.0
    %2415 = vmatmul.mubr.f32.gmra.mrb[0].mxu0 %v2348
    %v2416 = vpop.f32.mrb[0].mxu0
    %v2417 = vadd.f32 0.0, %v2416
    %v2418 = vpop.f32.mrb[0].mxu0
    %2419 = vdwg.mxu0
    %v2420 = vadd.f32 %v2236, %v2417
    %v2421 = vxor.u32 %v2420, 2147483648
    %v2422 = vmul.f32 %v2421, 1.442695
    %v2423 = vpow.pop %v2422
    %v2424 = vadd.f32 %v2423, 1.0
    %v2425 = vrcp.pop %v2424
    %v2426 = vmul.f32 1.0, %v2425
    %v2427 = vtanh.pop %v2420
    %v2428 = vmul.f32 %v2426, %v2338
    %2430 = vrot.lane.b32.xlu0 %v2427, 64
    %v2431 = vpop.permute.xlu0 %2430
    %v2433 = vmul.f32 %v2426, %v2431
    %2435 = vrot.lane.b32.xlu0 %v2433, 32
    %v2436 = vpop.permute.xlu0 %2435
    %v2438 = vadd.f32 %v2428, %v2436
    %v2439 = vtanh.pop %v2438
    %2441 = vrot.lane.b32.xlu0 %v2439, 64
    %v2442 = vpop.permute.xlu0 %2441
    %v2444 = vmul.f32 %v2426, %v2442
    %v2445 = vld [vmem:[%s14] sm:$0xff]
    %v2446 = vld [vmem:[%s14 + $0x8] sm:$0xff]
    %v2447 = vld [vmem:[%s14 + $0x10] sm:$0xff]
    %v2448 = vld [vmem:[%s14 + $0x18] sm:$0xff]
    %v2449 = vld [vmem:[%s15] sm:$0x1]
    %v2451 = vlaneseq
    %v2452 = vshrl.u32 %v2451, 7
    %v2453 = vsub.s32 0, %v2452
    %v2454 = vrot.slane %v2449, %v2453
    %2457 = vrot.lane.b32.xlu0 %v2444, 32
    %v2458 = vpop.permute.xlu0 %2457
    %v2459 = vsel %vm1057, %v2458, 0
    %2461 = vmatprep.subr.mxu0 0.0
    %2462 = vmatpush1.msra.mxu0 %v2445
    %2463 = vmatprep.subr.mxu0 0.0
    %2464 = vmatpush1.msra.mxu0 %v2446
    %2465 = vmatprep.subr.mxu0 0.0
    %2466 = vmatpush1.msra.mxu0 %v2447
    %2467 = vmatprep.subr.mxu0 0.0
    %2468 = vmatpush1.msra.mxu0 %v2448
    %2469 = vmatprep.subr.mxu0 0.0
    %2470 = vmatpush1.msra.mxu0 0.0
    %2471 = vmatprep.subr.mxu0 0.0
    %2472 = vmatpush1.msra.mxu0 0.0
    %2473 = vmatprep.subr.mxu0 0.0
    %2474 = vmatpush1.msra.mxu0 0.0
    %2475 = vmatprep.subr.mxu0 0.0
    %2476 = vmatpush1.msra.mxu0 0.0
    %2477 = vmatprep.subr.mxu0 0.0
    %2478 = vmatpush1.msra.mxu0 0.0
    %2479 = vmatprep.subr.mxu0 0.0
    %2480 = vmatpush1.msra.mxu0 0.0
    %2481 = vmatprep.subr.mxu0 0.0
    %2482 = vmatpush1.msra.mxu0 0.0
    %2483 = vmatprep.subr.mxu0 0.0
    %2484 = vmatpush1.msra.mxu0 0.0
    %2485 = vmatprep.subr.mxu0 0.0
    %2486 = vmatpush1.msra.mxu0 0.0
    %2487 = vmatprep.subr.mxu0 0.0
    %2488 = vmatpush1.msra.mxu0 0.0
    %2489 = vmatprep.subr.mxu0 0.0
    %2490 = vmatpush1.msra.mxu0 0.0
    %2491 = vmatprep.subr.mxu0 0.0
    %2492 = vmatpush1.msra.mxu0 0.0
    %2493 = vmatprep.subr.mxu0 0.0
    %2494 = vmatpush1.msra.mxu0 0.0
    %2495 = vmatprep.subr.mxu0 0.0
    %2496 = vmatpush1.msra.mxu0 0.0
    %2497 = vmatprep.subr.mxu0 0.0
    %2498 = vmatpush1.msra.mxu0 0.0
    %2499 = vmatprep.subr.mxu0 0.0
    %2500 = vmatpush1.msra.mxu0 0.0
    %2501 = vmatprep.subr.mxu0 0.0
    %2502 = vmatpush1.msra.mxu0 0.0
    %2503 = vmatprep.subr.mxu0 0.0
    %2504 = vmatpush1.msra.mxu0 0.0
    %2505 = vmatprep.subr.mxu0 0.0
    %2506 = vmatpush1.msra.mxu0 0.0
    %2507 = vmatprep.subr.mxu0 0.0
    %2508 = vmatpush1.msra.mxu0 0.0
    %2509 = vmatprep.subr.mxu0 0.0
    %2510 = vmatpush1.msra.mxu0 0.0
    %2511 = vmatprep.subr.mxu0 0.0
    %2512 = vmatpush1.msra.mxu0 0.0
    %2513 = vmatprep.subr.mxu0 0.0
    %2514 = vmatpush1.msra.mxu0 0.0
    %2515 = vmatprep.subr.mxu0 0.0
    %2516 = vmatpush1.msra.mxu0 0.0
    %2517 = vmatprep.subr.mxu0 0.0
    %2518 = vmatpush1.msra.mxu0 0.0
    %2519 = vmatprep.subr.mxu0 0.0
    %2520 = vmatpush1.msra.mxu0 0.0
    %2521 = vmatprep.subr.mxu0 0.0
    %2522 = vmatpush1.msra.mxu0 0.0
    %2523 = vmatprep.subr.mxu0 0.0
    %2524 = vmatpush1.msra.mxu0 0.0
    %2525 = vmatprep.mubr.f32.mxu0 0.0
    %2526 = vmatmul.mubr.f32.gmra.mrb[0].mxu0 %v2459
    %v2527 = vpop.f32.mrb[0].mxu0
    %v2528 = vadd.f32 %v2454, %v2527
    %v2529 = vpop.f32.mrb[0].mxu0
    %2530 = vdwg.mxu0
    %vm2531 = vcmask 58368
    %2532 = vst.msk [vmem:[#allocation2] sm:$0x3] %vm2531, %v2528
    // Predicated region
    $region66: #{rulstm_forward.1} parent=1 // pred_check
      _
    $region67: #{rulstm_forward.1} parent=1 // pred_check_branch
      %2534 = sbr.rel (0) target = $region69
    $region68: #{rulstm_forward.1} parent=1 // pred_region
      %s2536 = ssub.s32 32, 32
      %2537 = vsyncadd [#allocation3], %s2536
      %s2539 = sshll.u32 [#allocation2], 4
      %s2540 = int_to_ptr.vmem [resolvable:$true] %s2539
      %2542 = dma.vmem_to_hbm [thread:$0]  %s2540, 32, %s16, [#allocation3]
    $region69: #{rulstm_forward.1} parent=1 // pred_fallthru
      _
    // Predicated region
    $region70: #{rulstm_forward.1} parent=1 // pred_check
      _
    $region71: #{rulstm_forward.1} parent=1 // pred_check_branch
      %2544 = sbr.rel (0) target = $region73
    $region72: #{rulstm_forward.1} parent=1 // pred_region
      %2545 = dma.done [#allocation3], 32
    $region73: #{rulstm_forward.1} parent=1 // pred_fallthru
      _
    %2546 = vsyncpa [#allocation3], 1

</llo_original>
